<compile_context>
chip_gen: v6e
topology: v6e:2x2x1
jax: 0.10.0
libtpu: 0.0.40
codegen_flags: <defaults>
</compile_context>

<pallas_src>
import functools

import jax
import jax.numpy as jnp
from jax.experimental import pallas as pl
from jax.experimental.pallas import tpu as pltpu


def _round_up(n, m):
    return ((n + m - 1) // m) * m


def _pad_to(a, shape):
    # NOTE: fused-LayerNorm correctness relies on this padding being EXACT
    # zeros so padded lanes of every intermediate stay exactly 0.
    return jnp.pad(a, [(0, s - d) for s, d in zip(shape, a.shape)])


# ----------------------------------------------------------------------------
# Fused Decoder kernel: all ResidualBlocks in one body (layer loop unrolled).
# ----------------------------------------------------------------------------
def _fused_decoder_kernel(x_ref, *refs, layer_dims, eps, carry_dtype):
    """refs = 3 param refs per layer (wcat, w2, vec_slab) + o_ref.

    layer_dims[i] = (d_hidden_padded, d_out_real, d_out_padded).
    vec_slab rows: 0=[b1 | b_skip], 1=[b2 | 0], 2=[gamma | 0], 3=[beta | 0].
    """
    o_ref = refs[-1]
    params = refs[:-1]

    x = x_ref[...].astype(carry_dtype)

    for li, (dh_p, do_r, do_p) in enumerate(layer_dims):
        wcat, w2, vec = params[3 * li: 3 * li + 3]

        bcat = vec[0:1, :]            # (1, dh_p + do_p) f32
        b2 = vec[1:2, :do_p]          # (1, do_p) f32
        gamma = vec[2:3, :do_p]
        beta = vec[3:4, :do_p]

        # One wide MXU matmul for the dense-path first Linear and the skip
        # Linear (they share the LHS):  x @ [W1 | W_skip] + [b1 | b_skip].
        hc = jnp.dot(x.astype(wcat.dtype), wcat[...],
                     preferred_element_type=jnp.float32) + bcat
        h = jnp.maximum(hc[:, :dh_p], 0.0)        # dense-path hidden (ReLU)
        skip = hc[:, dh_p:]                       # skip path (no ReLU)

        dense = jnp.dot(h.astype(w2.dtype), w2[...],
                        preferred_element_type=jnp.float32)
        y = dense + b2 + skip                     # padded lanes are exactly 0

        # One-pass LayerNorm over the REAL d_out lanes; padded lanes of y are
        # exactly 0, so full-width sums equal real-lane sums.
        inv_n = 1.0 / do_r
        mean = jnp.sum(y, axis=-1, keepdims=True) * inv_n
        var = jnp.maximum(
            jnp.sum(y * y, axis=-1, keepdims=True) * inv_n - mean * mean, 0.0)
        y_norm = (y - mean) * jax.lax.rsqrt(var + eps)
        # gamma/beta are zero-padded -> padded lanes of the next x are exactly 0.
        x = (y_norm * gamma + beta).astype(carry_dtype)

    o_ref[...] = x.astype(o_ref.dtype)


# ----------------------------------------------------------------------------
# Parameter packing: pad to 128 lanes, concat [W1|Wskip], pack tiny vectors.
# ----------------------------------------------------------------------------
def _prepare_fused_params(layer_params, param_dtype):
    fused, dims = [], []
    for (w1, b1, w2, b2, ws, bs, gamma, beta) in layer_params:
        d_in, d_h = w1.shape
        d_out = w2.shape[1]
        d_in_p = _round_up(d_in, 128)
        d_h_p = _round_up(d_h, 128)
        d_o_p = _round_up(d_out, 128)
        wide = d_h_p + d_o_p

        wcat = jnp.concatenate([_pad_to(w1, (d_in_p, d_h_p)),
                                _pad_to(ws, (d_in_p, d_o_p))], axis=1)
        w2p = _pad_to(w2, (d_h_p, d_o_p))

        # Pack the four tiny per-layer vectors into one (8, wide) f32 slab
        # (biases / gamma / beta stay f32 even when weights are bf16).
        bcat = jnp.concatenate([_pad_to(b1, (1, d_h_p)),
                                _pad_to(bs, (1, d_o_p))], axis=1)
        vec = jnp.zeros((8, wide), jnp.float32)
        vec = vec.at[0:1, :].set(bcat.astype(jnp.float32))
        vec = vec.at[1:2, :d_o_p].set(_pad_to(b2, (1, d_o_p)).astype(jnp.float32))
        vec = vec.at[2:3, :d_o_p].set(_pad_to(gamma, (1, d_o_p)).astype(jnp.float32))
        vec = vec.at[3:4, :d_o_p].set(_pad_to(beta, (1, d_o_p)).astype(jnp.float32))

        fused.extend([wcat.astype(param_dtype), w2p.astype(param_dtype), vec])
        dims.append((d_h_p, d_out, d_o_p))
    return fused, tuple(dims)


# ----------------------------------------------------------------------------
# Wrapper: one pallas_call for the whole decoder stack.
# ----------------------------------------------------------------------------
def decoder_forward(x, layer_params, *, block_b=None, eps=1e-5,
                    param_dtype=jnp.bfloat16):
    """x: (B, d_in0) -> (B, d_out_last). Whole decoder in one Pallas kernel."""
    B, d_in0 = x.shape
    d_in0_p = _round_up(d_in0, 128)

    B_p = _round_up(B, 8)
    if block_b is None:
        # >=2 grid steps when the batch allows (v7x megacore) and up to 256
        # rows per step (v6e/v7x MXU is 256-wide).
        block_b = max(8, min(256, _round_up(max(B_p // 2, 8), 8)))
    block_b = max(8, _round_up(min(block_b, B_p), 8))
    B_p = _round_up(B_p, block_b)

    x_p = _pad_to(x, (B_p, d_in0_p))
    fused, dims = _prepare_fused_params(layer_params, param_dtype)
    d_out_last = layer_params[-1][2].shape[1]
    d_out_last_p = dims[-1][2]
    carry_dtype = jnp.dtype(param_dtype)

    grid = (B_p // block_b,)

    # VMEM budget: single-buffered resident weights + double-buffered x/out
    # tiles + rough f32 intermediates of the unrolled body, with headroom.
    weight_bytes = sum(int(a.size) * a.dtype.itemsize for a in fused)
    io_bytes = 2 * block_b * (d_in0_p + d_out_last_p) * x.dtype.itemsize
    act_bytes = sum(4 * block_b * (dh_p + 3 * do_p) for (dh_p, _, do_p) in dims)
    vmem_limit = int(min(64 * 1024 * 1024,
                         max(8 * 1024 * 1024,
                             1.5 * (weight_bytes + io_bytes + act_bytes))))

    flops = 0
    for (w1, _b1, w2_, _b2, _ws, _bs, _g, _bt) in layer_params:
        d_in, d_h = w1.shape
        d_out = w2_.shape[1]
        flops += 2 * B_p * (d_in * (d_h + d_out) + d_h * d_out)
    bytes_accessed = int(weight_bytes
                         + x_p.size * x_p.dtype.itemsize
                         + B_p * d_out_last_p * x.dtype.itemsize)
    cost = pl.CostEstimate(flops=int(flops),
                           transcendentals=int(B_p * len(dims)),
                           bytes_accessed=bytes_accessed)

    kernel = functools.partial(_fused_decoder_kernel, layer_dims=dims, eps=eps,
                               carry_dtype=carry_dtype)
    compiler_params = pltpu.CompilerParams(
        dimension_semantics=("parallel",), vmem_limit_bytes=vmem_limit)

    def launch(single_buffer_weights):
        pm = ({"pipeline_mode": pl.Buffered(1)} if single_buffer_weights else {})

        def const_spec(a):
            # Full-array block, constant index -> weights stay resident in
            # VMEM across grid steps; single-buffered (double-buffering a
            # constant block only doubles the footprint).
            return pl.BlockSpec(a.shape, lambda i: (0, 0), **pm)

        in_specs = [pl.BlockSpec((block_b, d_in0_p), lambda i: (i, 0))]
        in_specs += [const_spec(a) for a in fused]
        out_spec = pl.BlockSpec((block_b, d_out_last_p), lambda i: (i, 0))

        return pl.pallas_call(
            kernel,
            out_shape=jax.ShapeDtypeStruct((B_p, d_out_last_p), x.dtype),
            grid_spec=pltpu.PrefetchScalarGridSpec(
                num_scalar_prefetch=0,
                grid=grid,
                in_specs=in_specs,
                out_specs=out_spec,
            ),
            compiler_params=compiler_params,
            cost_estimate=cost,
        )(x_p, *fused)

    try:
        out_p = launch(single_buffer_weights=True)
    except Exception:
        # TODO(synk): this jax/Mosaic version rejected pl.Buffered(1) on a
        # pallas_call operand; fall back to default double-buffered weights.
        out_p = launch(single_buffer_weights=False)

    # TODO(synk): for decoders whose single-buffered weight stack exceeds
    # ~40-50 MiB (v7x), stream weights layer-by-layer from HBM via
    # memory_space=pl.ANY + pltpu.make_async_copy instead of passing every
    # layer's weights as a resident pallas_call input.

    return out_p[:B, :d_out_last]


# ----------------------------------------------------------------------------
# Deterministic parameter init (mimics nn.Linear / nn.LayerNorm shapes)
# ----------------------------------------------------------------------------
def init_residual_block_params(key, d_in, d_hidden, d_out, dtype=jnp.float32):
    ks = jax.random.split(key, 6)

    def linear(kw, kb, fan_in, fan_out):
        bound = 1.0 / jnp.sqrt(fan_in)
        w = jax.random.uniform(kw, (fan_in, fan_out), dtype, -bound, bound)
        b = jax.random.uniform(kb, (1, fan_out), dtype, -bound, bound)
        return w, b

    w1, b1 = linear(ks[0], ks[1], d_in, d_hidden)
    w2, b2 = linear(ks[2], ks[3], d_hidden, d_out)
    ws, bs = linear(ks[4], ks[5], d_in, d_out)
    gamma = jnp.ones((1, d_out), dtype)
    beta = jnp.zeros((1, d_out), dtype)
    return (w1, b1, w2, b2, ws, bs, gamma, beta)


def init_decoder_params(key, input_dims, hidden_dims, output_dims, num_layers):
    keys = jax.random.split(key, num_layers)
    return [
        init_residual_block_params(keys[i], input_dims[i], hidden_dims[i],
                                   output_dims[i])
        for i in range(num_layers)
    ]


# ----------------------------------------------------------------------------
# Pure-JAX reference
# ----------------------------------------------------------------------------
def decoder_ref(x, layer_params, eps=1e-5):
    for (w1, b1, w2, b2, ws, bs, gamma, beta) in layer_params:
        h = jnp.maximum(x @ w1 + b1, 0.0)
        dense = h @ w2 + b2
        skip = x @ ws + bs
        y = dense + skip
        mean = jnp.mean(y, axis=-1, keepdims=True)
        var = jnp.mean((y - mean) ** 2, axis=-1, keepdims=True)
        x = (y - mean) * jax.lax.rsqrt(var + eps) * gamma + beta
    return x


# ----------------------------------------------------------------------------
if __name__ == "__main__":
    # TODO(synk): Dropout is identity (inference mode); training-mode dropout
    # would need pltpu.prng_* inside the kernel.

    # Small TiDE-decoder-like config: 2 residual blocks.
    input_dims = [32, 48]
    hidden_dims = [64, 64]
    output_dims = [48, 24]
    num_layers = 2
    batch = 16

    key = jax.random.PRNGKey(0)
    k_x, k_p = jax.random.split(key)
    x = jax.random.normal(k_x, (batch, input_dims[0]), jnp.float32)
    params = init_decoder_params(k_p, input_dims, hidden_dims, output_dims,
                                 num_layers)

    ref = decoder_ref(x, params)

    # f32-weight path: tight tolerance against the pure-JAX reference.
    out_f32 = jax.block_until_ready(
        decoder_forward(x, params, param_dtype=jnp.float32))
    assert out_f32.shape == (batch, output_dims[-1]), out_f32.shape
    assert jnp.allclose(out_f32, ref, atol=1e-4, rtol=1e-4), (
        float(jnp.max(jnp.abs(out_f32 - ref))))

    # Default bf16-weight path (f32 accumulation / LN): looser tolerance.
    out_bf16 = jax.block_until_ready(decoder_forward(x, params))
    assert out_bf16.shape == (batch, output_dims[-1]), out_bf16.shape
    assert jnp.allclose(out_bf16, ref, atol=7.5e-2, rtol=7.5e-2), (
        float(jnp.max(jnp.abs(out_bf16 - ref))))

    print("KERNEL_OK")
</pallas_src>

<mosaic_0001>
module attributes {stable_mosaic.version = 11 : i64} {
  func.func @_fused_decoder_kernel(%arg0: i32, %arg1: memref<8x128xf32, #tpu.memory_space<vmem>>, %arg2: memref<128x256xf32, #tpu.memory_space<vmem>>, %arg3: memref<128x128xf32, #tpu.memory_space<vmem>>, %arg4: memref<8x256xf32, #tpu.memory_space<vmem>>, %arg5: memref<128x256xf32, #tpu.memory_space<vmem>>, %arg6: memref<128x128xf32, #tpu.memory_space<vmem>>, %arg7: memref<8x256xf32, #tpu.memory_space<vmem>>, %arg8: memref<8x128xf32, #tpu.memory_space<vmem>>) attributes {dimension_semantics = [#tpu.dimension_semantics<parallel>], iteration_bounds = array<i64: 2>, scalar_prefetch = 0 : i64, scratch_operands = 0 : i64, tpu.core_type = #tpu.core_type<tc>, window_params = [{transform_indices = @transform_0, window_bounds = array<i64: 8, 128>}, {pipeline_mode = #tpu.pipeline_mode<synchronous>, transform_indices = @transform_1, window_bounds = array<i64: 128, 256>}, {pipeline_mode = #tpu.pipeline_mode<synchronous>, transform_indices = @transform_2, window_bounds = array<i64: 128, 128>}, {pipeline_mode = #tpu.pipeline_mode<synchronous>, transform_indices = @transform_3, window_bounds = array<i64: 8, 256>}, {pipeline_mode = #tpu.pipeline_mode<synchronous>, transform_indices = @transform_4, window_bounds = array<i64: 128, 256>}, {pipeline_mode = #tpu.pipeline_mode<synchronous>, transform_indices = @transform_5, window_bounds = array<i64: 128, 128>}, {pipeline_mode = #tpu.pipeline_mode<synchronous>, transform_indices = @transform_6, window_bounds = array<i64: 8, 256>}, {transform_indices = @transform_7, window_bounds = array<i64: 8, 128>}]} {
    %c0 = arith.constant 0 : index
    %c0_0 = arith.constant 0 : index
    %0 = vector.load %arg1[%c0, %c0_0] : memref<8x128xf32, #tpu.memory_space<vmem>>, vector<8x128xf32>
    %c0_1 = arith.constant 0 : index
    %c0_2 = arith.constant 0 : index
    %1 = vector.load %arg4[%c0_1, %c0_2] : memref<8x256xf32, #tpu.memory_space<vmem>>, vector<1x256xf32>
    %c1 = arith.constant 1 : index
    %c0_3 = arith.constant 0 : index
    %2 = vector.load %arg4[%c1, %c0_3] : memref<8x256xf32, #tpu.memory_space<vmem>>, vector<1x128xf32>
    %c2 = arith.constant 2 : index
    %c0_4 = arith.constant 0 : index
    %3 = vector.load %arg4[%c2, %c0_4] : memref<8x256xf32, #tpu.memory_space<vmem>>, vector<1x128xf32>
    %c3 = arith.constant 3 : index
    %c0_5 = arith.constant 0 : index
    %4 = vector.load %arg4[%c3, %c0_5] : memref<8x256xf32, #tpu.memory_space<vmem>>, vector<1x128xf32>
    %c0_6 = arith.constant 0 : index
    %c0_7 = arith.constant 0 : index
    %5 = vector.load %arg2[%c0_6, %c0_7] : memref<128x256xf32, #tpu.memory_space<vmem>>, vector<128x256xf32>
    %cst = arith.constant dense<0.000000e+00> : vector<8x256xf32>
    %6 = tpu.matmul %0, %5, %cst {dimension_numbers = #tpu.dot_dimension_numbers<[1], [0], [0], [1], [0, 0, 1, 1], [], []>} : vector<8x128xf32>, vector<128x256xf32>, vector<8x256xf32> -> vector<8x256xf32>
    %7 = vector.broadcast %1 : vector<1x256xf32> to vector<8x256xf32>
    %8 = arith.addf %6, %7 : vector<8x256xf32>
    %9 = vector.extract_strided_slice %8 {offsets = [0, 0], sizes = [8, 128], strides = [1, 1]} : vector<8x256xf32> to vector<8x128xf32>
    %cst_8 = arith.constant 0.000000e+00 : f32
    %10 = vector.broadcast %cst_8 : f32 to vector<8x128xf32>
    %11 = arith.maximumf %9, %10 : vector<8x128xf32>
    %12 = vector.extract_strided_slice %8 {offsets = [0, 128], sizes = [8, 128], strides = [1, 1]} : vector<8x256xf32> to vector<8x128xf32>
    %c0_9 = arith.constant 0 : index
    %c0_10 = arith.constant 0 : index
    %13 = vector.load %arg3[%c0_9, %c0_10] : memref<128x128xf32, #tpu.memory_space<vmem>>, vector<128x128xf32>
    %cst_11 = arith.constant dense<0.000000e+00> : vector<8x128xf32>
    %14 = tpu.matmul %11, %13, %cst_11 {dimension_numbers = #tpu.dot_dimension_numbers<[1], [0], [0], [1], [0, 0, 1, 1], [], []>} : vector<8x128xf32>, vector<128x128xf32>, vector<8x128xf32> -> vector<8x128xf32>
    %15 = vector.broadcast %2 : vector<1x128xf32> to vector<8x128xf32>
    %16 = arith.addf %14, %15 : vector<8x128xf32>
    %17 = arith.addf %16, %12 : vector<8x128xf32>
    %cst_12 = arith.constant dense<0.000000e+00> : vector<8xf32>
    %18 = vector.multi_reduction <add>, %17, %cst_12 [1] : vector<8x128xf32> to vector<8xf32>
    %19 = vector.shape_cast %18 : vector<8xf32> to vector<8x1xf32>
    %cst_13 = arith.constant 0.020833334 : f32
    %20 = vector.broadcast %cst_13 : f32 to vector<8x1xf32>
    %21 = arith.mulf %19, %20 : vector<8x1xf32>
    %22 = arith.mulf %17, %17 : vector<8x128xf32>
    %cst_14 = arith.constant dense<0.000000e+00> : vector<8xf32>
    %23 = vector.multi_reduction <add>, %22, %cst_14 [1] : vector<8x128xf32> to vector<8xf32>
    %24 = vector.shape_cast %23 : vector<8xf32> to vector<8x1xf32>
    %cst_15 = arith.constant 0.020833334 : f32
    %25 = vector.broadcast %cst_15 : f32 to vector<8x1xf32>
    %26 = arith.mulf %24, %25 : vector<8x1xf32>
    %27 = arith.mulf %21, %21 : vector<8x1xf32>
    %28 = arith.subf %26, %27 : vector<8x1xf32>
    %cst_16 = arith.constant 0.000000e+00 : f32
    %29 = vector.broadcast %cst_16 : f32 to vector<8x1xf32>
    %30 = arith.maximumf %28, %29 : vector<8x1xf32>
    %31 = vector.broadcast %21 : vector<8x1xf32> to vector<8x128xf32>
    %32 = arith.subf %17, %31 : vector<8x128xf32>
    %cst_17 = arith.constant 9.99999974E-6 : f32
    %33 = vector.broadcast %cst_17 : f32 to vector<8x1xf32>
    %34 = arith.addf %30, %33 : vector<8x1xf32>
    %35 = math.rsqrt %34 : vector<8x1xf32>
    %36 = vector.broadcast %35 : vector<8x1xf32> to vector<8x128xf32>
    %37 = arith.mulf %32, %36 : vector<8x128xf32>
    %38 = vector.broadcast %3 : vector<1x128xf32> to vector<8x128xf32>
    %39 = arith.mulf %37, %38 : vector<8x128xf32>
    %40 = vector.broadcast %4 : vector<1x128xf32> to vector<8x128xf32>
    %41 = arith.addf %39, %40 : vector<8x128xf32>
    %c0_18 = arith.constant 0 : index
    %c0_19 = arith.constant 0 : index
    %42 = vector.load %arg7[%c0_18, %c0_19] : memref<8x256xf32, #tpu.memory_space<vmem>>, vector<1x256xf32>
    %c1_20 = arith.constant 1 : index
    %c0_21 = arith.constant 0 : index
    %43 = vector.load %arg7[%c1_20, %c0_21] : memref<8x256xf32, #tpu.memory_space<vmem>>, vector<1x128xf32>
    %c2_22 = arith.constant 2 : index
    %c0_23 = arith.constant 0 : index
    %44 = vector.load %arg7[%c2_22, %c0_23] : memref<8x256xf32, #tpu.memory_space<vmem>>, vector<1x128xf32>
    %c3_24 = arith.constant 3 : index
    %c0_25 = arith.constant 0 : index
    %45 = vector.load %arg7[%c3_24, %c0_25] : memref<8x256xf32, #tpu.memory_space<vmem>>, vector<1x128xf32>
    %c0_26 = arith.constant 0 : index
    %c0_27 = arith.constant 0 : index
    %46 = vector.load %arg5[%c0_26, %c0_27] : memref<128x256xf32, #tpu.memory_space<vmem>>, vector<128x256xf32>
    %cst_28 = arith.constant dense<0.000000e+00> : vector<8x256xf32>
    %47 = tpu.matmul %41, %46, %cst_28 {dimension_numbers = #tpu.dot_dimension_numbers<[1], [0], [0], [1], [0, 0, 1, 1], [], []>} : vector<8x128xf32>, vector<128x256xf32>, vector<8x256xf32> -> vector<8x256xf32>
    %48 = vector.broadcast %42 : vector<1x256xf32> to vector<8x256xf32>
    %49 = arith.addf %47, %48 : vector<8x256xf32>
    %50 = vector.extract_strided_slice %49 {offsets = [0, 0], sizes = [8, 128], strides = [1, 1]} : vector<8x256xf32> to vector<8x128xf32>
    %cst_29 = arith.constant 0.000000e+00 : f32
    %51 = vector.broadcast %cst_29 : f32 to vector<8x128xf32>
    %52 = arith.maximumf %50, %51 : vector<8x128xf32>
    %53 = vector.extract_strided_slice %49 {offsets = [0, 128], sizes = [8, 128], strides = [1, 1]} : vector<8x256xf32> to vector<8x128xf32>
    %c0_30 = arith.constant 0 : index
    %c0_31 = arith.constant 0 : index
    %54 = vector.load %arg6[%c0_30, %c0_31] : memref<128x128xf32, #tpu.memory_space<vmem>>, vector<128x128xf32>
    %cst_32 = arith.constant dense<0.000000e+00> : vector<8x128xf32>
    %55 = tpu.matmul %52, %54, %cst_32 {dimension_numbers = #tpu.dot_dimension_numbers<[1], [0], [0], [1], [0, 0, 1, 1], [], []>} : vector<8x128xf32>, vector<128x128xf32>, vector<8x128xf32> -> vector<8x128xf32>
    %56 = vector.broadcast %43 : vector<1x128xf32> to vector<8x128xf32>
    %57 = arith.addf %55, %56 : vector<8x128xf32>
    %58 = arith.addf %57, %53 : vector<8x128xf32>
    %cst_33 = arith.constant dense<0.000000e+00> : vector<8xf32>
    %59 = vector.multi_reduction <add>, %58, %cst_33 [1] : vector<8x128xf32> to vector<8xf32>
    %60 = vector.shape_cast %59 : vector<8xf32> to vector<8x1xf32>
    %cst_34 = arith.constant 0.0416666679 : f32
    %61 = vector.broadcast %cst_34 : f32 to vector<8x1xf32>
    %62 = arith.mulf %60, %61 : vector<8x1xf32>
    %63 = arith.mulf %58, %58 : vector<8x128xf32>
    %cst_35 = arith.constant dense<0.000000e+00> : vector<8xf32>
    %64 = vector.multi_reduction <add>, %63, %cst_35 [1] : vector<8x128xf32> to vector<8xf32>
    %65 = vector.shape_cast %64 : vector<8xf32> to vector<8x1xf32>
    %cst_36 = arith.constant 0.0416666679 : f32
    %66 = vector.broadcast %cst_36 : f32 to vector<8x1xf32>
    %67 = arith.mulf %65, %66 : vector<8x1xf32>
    %68 = arith.mulf %62, %62 : vector<8x1xf32>
    %69 = arith.subf %67, %68 : vector<8x1xf32>
    %cst_37 = arith.constant 0.000000e+00 : f32
    %70 = vector.broadcast %cst_37 : f32 to vector<8x1xf32>
    %71 = arith.maximumf %69, %70 : vector<8x1xf32>
    %72 = vector.broadcast %62 : vector<8x1xf32> to vector<8x128xf32>
    %73 = arith.subf %58, %72 : vector<8x128xf32>
    %cst_38 = arith.constant 9.99999974E-6 : f32
    %74 = vector.broadcast %cst_38 : f32 to vector<8x1xf32>
    %75 = arith.addf %71, %74 : vector<8x1xf32>
    %76 = math.rsqrt %75 : vector<8x1xf32>
    %77 = vector.broadcast %76 : vector<8x1xf32> to vector<8x128xf32>
    %78 = arith.mulf %73, %77 : vector<8x128xf32>
    %79 = vector.broadcast %44 : vector<1x128xf32> to vector<8x128xf32>
    %80 = arith.mulf %78, %79 : vector<8x128xf32>
    %81 = vector.broadcast %45 : vector<1x128xf32> to vector<8x128xf32>
    %82 = arith.addf %80, %81 : vector<8x128xf32>
    %c0_39 = arith.constant 0 : index
    %c0_40 = arith.constant 0 : index
    %83 = vector.load %arg8[%c0_39, %c0_40] : memref<8x128xf32, #tpu.memory_space<vmem>>, vector<8x128xf32>
    tpu.vector_store %arg8[%c0_39, %c0_40], %82 {strides = array<i32>} : memref<8x128xf32, #tpu.memory_space<vmem>>, vector<8x128xf32>,
    return
  }
  func.func @transform_0(%arg0: i32) -> (i32, i32) {
    %c0_i32 = arith.constant 0 : i32
    %c0_i32_0 = arith.constant 0 : i32
    return %arg0, %c0_i32 : i32, i32
  }
  func.func @transform_1(%arg0: i32) -> (i32, i32) {
    %c0_i32 = arith.constant 0 : i32
    %c0_i32_0 = arith.constant 0 : i32
    %c0_i32_1 = arith.constant 0 : i32
    return %c0_i32, %c0_i32_0 : i32, i32
  }
  func.func @transform_2(%arg0: i32) -> (i32, i32) {
    %c0_i32 = arith.constant 0 : i32
    %c0_i32_0 = arith.constant 0 : i32
    %c0_i32_1 = arith.constant 0 : i32
    return %c0_i32, %c0_i32_0 : i32, i32
  }
  func.func @transform_3(%arg0: i32) -> (i32, i32) {
    %c0_i32 = arith.constant 0 : i32
    %c0_i32_0 = arith.constant 0 : i32
    %c0_i32_1 = arith.constant 0 : i32
    return %c0_i32, %c0_i32_0 : i32, i32
  }
  func.func @transform_4(%arg0: i32) -> (i32, i32) {
    %c0_i32 = arith.constant 0 : i32
    %c0_i32_0 = arith.constant 0 : i32
    %c0_i32_1 = arith.constant 0 : i32
    return %c0_i32, %c0_i32_0 : i32, i32
  }
  func.func @transform_5(%arg0: i32) -> (i32, i32) {
    %c0_i32 = arith.constant 0 : i32
    %c0_i32_0 = arith.constant 0 : i32
    %c0_i32_1 = arith.constant 0 : i32
    return %c0_i32, %c0_i32_0 : i32, i32
  }
  func.func @transform_6(%arg0: i32) -> (i32, i32) {
    %c0_i32 = arith.constant 0 : i32
    %c0_i32_0 = arith.constant 0 : i32
    %c0_i32_1 = arith.constant 0 : i32
    return %c0_i32, %c0_i32_0 : i32, i32
  }
  func.func @transform_7(%arg0: i32) -> (i32, i32) {
    %c0_i32 = arith.constant 0 : i32
    %c0_i32_0 = arith.constant 0 : i32
    return %arg0, %c0_i32 : i32, i32
  }
}

module attributes {stable_mosaic.version = 11 : i64} {
  func.func @_fused_decoder_kernel(%arg0: i32, %arg1: memref<8x128xf32, #tpu.memory_space<vmem>>, %arg2: memref<128x256xf32, #tpu.memory_space<vmem>>, %arg3: memref<128x128xf32, #tpu.memory_space<vmem>>, %arg4: memref<8x256xf32, #tpu.memory_space<vmem>>, %arg5: memref<128x256xf32, #tpu.memory_space<vmem>>, %arg6: memref<128x128xf32, #tpu.memory_space<vmem>>, %arg7: memref<8x256xf32, #tpu.memory_space<vmem>>, %arg8: memref<8x128xf32, #tpu.memory_space<vmem>>) attributes {dimension_semantics = [#tpu.dimension_semantics<parallel>], iteration_bounds = array<i64: 2>, scalar_prefetch = 0 : i64, scratch_operands = 0 : i64, tpu.core_type = #tpu.core_type<tc>, window_params = [{transform_indices = @transform_0, window_bounds = array<i64: 8, 128>}, {pipeline_mode = #tpu.pipeline_mode<synchronous>, transform_indices = @transform_1, window_bounds = array<i64: 128, 256>}, {pipeline_mode = #tpu.pipeline_mode<synchronous>, transform_indices = @transform_2, window_bounds = array<i64: 128, 128>}, {pipeline_mode = #tpu.pipeline_mode<synchronous>, transform_indices = @transform_3, window_bounds = array<i64: 8, 256>}, {pipeline_mode = #tpu.pipeline_mode<synchronous>, transform_indices = @transform_4, window_bounds = array<i64: 128, 256>}, {pipeline_mode = #tpu.pipeline_mode<synchronous>, transform_indices = @transform_5, window_bounds = array<i64: 128, 128>}, {pipeline_mode = #tpu.pipeline_mode<synchronous>, transform_indices = @transform_6, window_bounds = array<i64: 8, 256>}, {transform_indices = @transform_7, window_bounds = array<i64: 8, 128>}]} {
    %c0 = arith.constant 0 : index
    %c0_0 = arith.constant 0 : index
    %0 = vector.load %arg1[%c0, %c0_0] : memref<8x128xf32, #tpu.memory_space<vmem>>, vector<8x128xf32>
    %c0_1 = arith.constant 0 : index
    %c0_2 = arith.constant 0 : index
    %1 = vector.load %arg4[%c0_1, %c0_2] : memref<8x256xf32, #tpu.memory_space<vmem>>, vector<1x256xf32>
    %c1 = arith.constant 1 : index
    %c0_3 = arith.constant 0 : index
    %2 = vector.load %arg4[%c1, %c0_3] : memref<8x256xf32, #tpu.memory_space<vmem>>, vector<1x128xf32>
    %c2 = arith.constant 2 : index
    %c0_4 = arith.constant 0 : index
    %3 = vector.load %arg4[%c2, %c0_4] : memref<8x256xf32, #tpu.memory_space<vmem>>, vector<1x128xf32>
    %c3 = arith.constant 3 : index
    %c0_5 = arith.constant 0 : index
    %4 = vector.load %arg4[%c3, %c0_5] : memref<8x256xf32, #tpu.memory_space<vmem>>, vector<1x128xf32>
    %c0_6 = arith.constant 0 : index
    %c0_7 = arith.constant 0 : index
    %5 = vector.load %arg2[%c0_6, %c0_7] : memref<128x256xf32, #tpu.memory_space<vmem>>, vector<128x256xf32>
    %cst = arith.constant dense<0.000000e+00> : vector<8x256xf32>
    %6 = tpu.matmul %0, %5, %cst {dimension_numbers = #tpu.dot_dimension_numbers<[1], [0], [0], [1], [0, 0, 1, 1], [], []>} : vector<8x128xf32>, vector<128x256xf32>, vector<8x256xf32> -> vector<8x256xf32>
    %7 = vector.broadcast %1 : vector<1x256xf32> to vector<8x256xf32>
    %8 = arith.addf %6, %7 : vector<8x256xf32>
    %9 = vector.extract_strided_slice %8 {offsets = [0, 0], sizes = [8, 128], strides = [1, 1]} : vector<8x256xf32> to vector<8x128xf32>
    %cst_8 = arith.constant 0.000000e+00 : f32
    %10 = vector.broadcast %cst_8 : f32 to vector<8x128xf32>
    %11 = arith.maximumf %9, %10 : vector<8x128xf32>
    %12 = vector.extract_strided_slice %8 {offsets = [0, 128], sizes = [8, 128], strides = [1, 1]} : vector<8x256xf32> to vector<8x128xf32>
    %c0_9 = arith.constant 0 : index
    %c0_10 = arith.constant 0 : index
    %13 = vector.load %arg3[%c0_9, %c0_10] : memref<128x128xf32, #tpu.memory_space<vmem>>, vector<128x128xf32>
    %cst_11 = arith.constant dense<0.000000e+00> : vector<8x128xf32>
    %14 = tpu.matmul %11, %13, %cst_11 {dimension_numbers = #tpu.dot_dimension_numbers<[1], [0], [0], [1], [0, 0, 1, 1], [], []>} : vector<8x128xf32>, vector<128x128xf32>, vector<8x128xf32> -> vector<8x128xf32>
    %15 = vector.broadcast %2 : vector<1x128xf32> to vector<8x128xf32>
    %16 = arith.addf %14, %15 : vector<8x128xf32>
    %17 = arith.addf %16, %12 : vector<8x128xf32>
    %cst_12 = arith.constant dense<0.000000e+00> : vector<8xf32>
    %18 = vector.multi_reduction <add>, %17, %cst_12 [1] : vector<8x128xf32> to vector<8xf32>
    %19 = vector.shape_cast %18 : vector<8xf32> to vector<8x1xf32>
    %cst_13 = arith.constant 0.020833334 : f32
    %20 = vector.broadcast %cst_13 : f32 to vector<8x1xf32>
    %21 = arith.mulf %19, %20 : vector<8x1xf32>
    %22 = arith.mulf %17, %17 : vector<8x128xf32>
    %cst_14 = arith.constant dense<0.000000e+00> : vector<8xf32>
    %23 = vector.multi_reduction <add>, %22, %cst_14 [1] : vector<8x128xf32> to vector<8xf32>
    %24 = vector.shape_cast %23 : vector<8xf32> to vector<8x1xf32>
    %cst_15 = arith.constant 0.020833334 : f32
    %25 = vector.broadcast %cst_15 : f32 to vector<8x1xf32>
    %26 = arith.mulf %24, %25 : vector<8x1xf32>
    %27 = arith.mulf %21, %21 : vector<8x1xf32>
    %28 = arith.subf %26, %27 : vector<8x1xf32>
    %cst_16 = arith.constant 0.000000e+00 : f32
    %29 = vector.broadcast %cst_16 : f32 to vector<8x1xf32>
    %30 = arith.maximumf %28, %29 : vector<8x1xf32>
    %31 = vector.broadcast %21 : vector<8x1xf32> to vector<8x128xf32>
    %32 = arith.subf %17, %31 : vector<8x128xf32>
    %cst_17 = arith.constant 9.99999974E-6 : f32
    %33 = vector.broadcast %cst_17 : f32 to vector<8x1xf32>
    %34 = arith.addf %30, %33 : vector<8x1xf32>
    %35 = math.rsqrt %34 : vector<8x1xf32>
    %36 = vector.broadcast %35 : vector<8x1xf32> to vector<8x128xf32>
    %37 = arith.mulf %32, %36 : vector<8x128xf32>
    %38 = vector.broadcast %3 : vector<1x128xf32> to vector<8x128xf32>
    %39 = arith.mulf %37, %38 : vector<8x128xf32>
    %40 = vector.broadcast %4 : vector<1x128xf32> to vector<8x128xf32>
    %41 = arith.addf %39, %40 : vector<8x128xf32>
    %c0_18 = arith.constant 0 : index
    %c0_19 = arith.constant 0 : index
    %42 = vector.load %arg7[%c0_18, %c0_19] : memref<8x256xf32, #tpu.memory_space<vmem>>, vector<1x256xf32>
    %c1_20 = arith.constant 1 : index
    %c0_21 = arith.constant 0 : index
    %43 = vector.load %arg7[%c1_20, %c0_21] : memref<8x256xf32, #tpu.memory_space<vmem>>, vector<1x128xf32>
    %c2_22 = arith.constant 2 : index
    %c0_23 = arith.constant 0 : index
    %44 = vector.load %arg7[%c2_22, %c0_23] : memref<8x256xf32, #tpu.memory_space<vmem>>, vector<1x128xf32>
    %c3_24 = arith.constant 3 : index
    %c0_25 = arith.constant 0 : index
    %45 = vector.load %arg7[%c3_24, %c0_25] : memref<8x256xf32, #tpu.memory_space<vmem>>, vector<1x128xf32>
    %c0_26 = arith.constant 0 : index
    %c0_27 = arith.constant 0 : index
    %46 = vector.load %arg5[%c0_26, %c0_27] : memref<128x256xf32, #tpu.memory_space<vmem>>, vector<128x256xf32>
    %cst_28 = arith.constant dense<0.000000e+00> : vector<8x256xf32>
    %47 = tpu.matmul %41, %46, %cst_28 {dimension_numbers = #tpu.dot_dimension_numbers<[1], [0], [0], [1], [0, 0, 1, 1], [], []>} : vector<8x128xf32>, vector<128x256xf32>, vector<8x256xf32> -> vector<8x256xf32>
    %48 = vector.broadcast %42 : vector<1x256xf32> to vector<8x256xf32>
    %49 = arith.addf %47, %48 : vector<8x256xf32>
    %50 = vector.extract_strided_slice %49 {offsets = [0, 0], sizes = [8, 128], strides = [1, 1]} : vector<8x256xf32> to vector<8x128xf32>
    %cst_29 = arith.constant 0.000000e+00 : f32
    %51 = vector.broadcast %cst_29 : f32 to vector<8x128xf32>
    %52 = arith.maximumf %50, %51 : vector<8x128xf32>
    %53 = vector.extract_strided_slice %49 {offsets = [0, 128], sizes = [8, 128], strides = [1, 1]} : vector<8x256xf32> to vector<8x128xf32>
    %c0_30 = arith.constant 0 : index
    %c0_31 = arith.constant 0 : index
    %54 = vector.load %arg6[%c0_30, %c0_31] : memref<128x128xf32, #tpu.memory_space<vmem>>, vector<128x128xf32>
    %cst_32 = arith.constant dense<0.000000e+00> : vector<8x128xf32>
    %55 = tpu.matmul %52, %54, %cst_32 {dimension_numbers = #tpu.dot_dimension_numbers<[1], [0], [0], [1], [0, 0, 1, 1], [], []>} : vector<8x128xf32>, vector<128x128xf32>, vector<8x128xf32> -> vector<8x128xf32>
    %56 = vector.broadcast %43 : vector<1x128xf32> to vector<8x128xf32>
    %57 = arith.addf %55, %56 : vector<8x128xf32>
    %58 = arith.addf %57, %53 : vector<8x128xf32>
    %cst_33 = arith.constant dense<0.000000e+00> : vector<8xf32>
    %59 = vector.multi_reduction <add>, %58, %cst_33 [1] : vector<8x128xf32> to vector<8xf32>
    %60 = vector.shape_cast %59 : vector<8xf32> to vector<8x1xf32>
    %cst_34 = arith.constant 0.0416666679 : f32
    %61 = vector.broadcast %cst_34 : f32 to vector<8x1xf32>
    %62 = arith.mulf %60, %61 : vector<8x1xf32>
    %63 = arith.mulf %58, %58 : vector<8x128xf32>
    %cst_35 = arith.constant dense<0.000000e+00> : vector<8xf32>
    %64 = vector.multi_reduction <add>, %63, %cst_35 [1] : vector<8x128xf32> to vector<8xf32>
    %65 = vector.shape_cast %64 : vector<8xf32> to vector<8x1xf32>
    %cst_36 = arith.constant 0.0416666679 : f32
    %66 = vector.broadcast %cst_36 : f32 to vector<8x1xf32>
    %67 = arith.mulf %65, %66 : vector<8x1xf32>
    %68 = arith.mulf %62, %62 : vector<8x1xf32>
    %69 = arith.subf %67, %68 : vector<8x1xf32>
    %cst_37 = arith.constant 0.000000e+00 : f32
    %70 = vector.broadcast %cst_37 : f32 to vector<8x1xf32>
    %71 = arith.maximumf %69, %70 : vector<8x1xf32>
    %72 = vector.broadcast %62 : vector<8x1xf32> to vector<8x128xf32>
    %73 = arith.subf %58, %72 : vector<8x128xf32>
    %cst_38 = arith.constant 9.99999974E-6 : f32
    %74 = vector.broadcast %cst_38 : f32 to vector<8x1xf32>
    %75 = arith.addf %71, %74 : vector<8x1xf32>
    %76 = math.rsqrt %75 : vector<8x1xf32>
    %77 = vector.broadcast %76 : vector<8x1xf32> to vector<8x128xf32>
    %78 = arith.mulf %73, %77 : vector<8x128xf32>
    %79 = vector.broadcast %44 : vector<1x128xf32> to vector<8x128xf32>
    %80 = arith.mulf %78, %79 : vector<8x128xf32>
    %81 = vector.broadcast %45 : vector<1x128xf32> to vector<8x128xf32>
    %82 = arith.addf %80, %81 : vector<8x128xf32>
    %c0_39 = arith.constant 0 : index
    %c0_40 = arith.constant 0 : index
    %83 = vector.load %arg8[%c0_39, %c0_40] : memref<8x128xf32, #tpu.memory_space<vmem>>, vector<8x128xf32>
    tpu.vector_store %arg8[%c0_39, %c0_40], %82 {strides = array<i32>} : memref<8x128xf32, #tpu.memory_space<vmem>>, vector<8x128xf32>,
    return
  }
  func.func @transform_0(%arg0: i32) -> (i32, i32) {
    %c0_i32 = arith.constant 0 : i32
    %c0_i32_0 = arith.constant 0 : i32
    return %arg0, %c0_i32 : i32, i32
  }
  func.func @transform_1(%arg0: i32) -> (i32, i32) {
    %c0_i32 = arith.constant 0 : i32
    %c0_i32_0 = arith.constant 0 : i32
    %c0_i32_1 = arith.constant 0 : i32
    return %c0_i32, %c0_i32_0 : i32, i32
  }
  func.func @transform_2(%arg0: i32) -> (i32, i32) {
    %c0_i32 = arith.constant 0 : i32
    %c0_i32_0 = arith.constant 0 : i32
    %c0_i32_1 = arith.constant 0 : i32
    return %c0_i32, %c0_i32_0 : i32, i32
  }
  func.func @transform_3(%arg0: i32) -> (i32, i32) {
    %c0_i32 = arith.constant 0 : i32
    %c0_i32_0 = arith.constant 0 : i32
    %c0_i32_1 = arith.constant 0 : i32
    return %c0_i32, %c0_i32_0 : i32, i32
  }
  func.func @transform_4(%arg0: i32) -> (i32, i32) {
    %c0_i32 = arith.constant 0 : i32
    %c0_i32_0 = arith.constant 0 : i32
    %c0_i32_1 = arith.constant 0 : i32
    return %c0_i32, %c0_i32_0 : i32, i32
  }
  func.func @transform_5(%arg0: i32) -> (i32, i32) {
    %c0_i32 = arith.constant 0 : i32
    %c0_i32_0 = arith.constant 0 : i32
    %c0_i32_1 = arith.constant 0 : i32
    return %c0_i32, %c0_i32_0 : i32, i32
  }
  func.func @transform_6(%arg0: i32) -> (i32, i32) {
    %c0_i32 = arith.constant 0 : i32
    %c0_i32_0 = arith.constant 0 : i32
    %c0_i32_1 = arith.constant 0 : i32
    return %c0_i32, %c0_i32_0 : i32, i32
  }
  func.func @transform_7(%arg0: i32) -> (i32, i32) {
    %c0_i32 = arith.constant 0 : i32
    %c0_i32_0 = arith.constant 0 : i32
    return %arg0, %c0_i32 : i32, i32
  }
}

</mosaic_0001>

<llo_original>
// kernel: tpu_custom_call.1
$region0: #{tpu_custom_call.1}
  #allocation0 [shape = 'u32[]', space=smem, size = 0x4, offset = 0x4, fixed_abs, tag = 'smem constant byte address 0x4 - core index']
  #allocation1 [shape = 'u32[144,128]{1,0:T(1,128)}', space=vmem, size = 0x12000, scoped, tag = 'internal scratch']
  %s0 = inlined_call_operand.hbm [shape: f32[16,128], index: 0, kind: input, shape index: {}]
  %s1 = inlined_call_operand.hbm [shape: f32[128,256], index: 1, kind: input, shape index: {}]
  %s2 = inlined_call_operand.hbm [shape: f32[128,128], index: 2, kind: input, shape index: {}]
  %s3 = inlined_call_operand.hbm [shape: f32[8,256], index: 3, kind: input, shape index: {}]
  %s4 = inlined_call_operand.hbm [shape: f32[128,256], index: 4, kind: input, shape index: {}]
  %s5 = inlined_call_operand.hbm [shape: f32[128,128], index: 5, kind: input, shape index: {}]
  %s6 = inlined_call_operand.hbm [shape: f32[8,256], index: 6, kind: input, shape index: {}]
  %s7 = inlined_call_operand.hbm [shape: f32[16,128], index: 7, kind: output, shape index: {}]
  %s8 = sld [smem:[#allocation0]]
  $region89: #{tpu_custom_call.1} parent=0
    _
  %s10 = ssub.s32 1, %s8
  %s11 = scalar_select 0, %s10, %s8
  $region1: #{tpu_custom_call.1} parent=0
    #allocation2 [shape = 'u8[8192]{0}', space=vmem, size = 0x2000, scoped, tag = 'input window, operand 0']
    #allocation3 [shape = 's32[2]{0}', space=sflag, size = 0x8, scoped, tag = 'scoped memory for tpu_custom_call.1']
    #allocation4 [shape = 's32[2]{0}', space=sflag, size = 0x8, scoped, tag = 'scoped memory for tpu_custom_call.1']
    #allocation5 [shape = 'u8[131072]{0}', space=vmem, size = 0x20000, scoped, tag = 'input window, operand 1, single buffered']
    #allocation6 [shape = 's32[1]{0}', space=sflag, size = 0x4, scoped, tag = 'scoped memory for tpu_custom_call.1']
    #allocation7 [shape = 'u8[65536]{0}', space=vmem, size = 0x10000, scoped, tag = 'input window, operand 2, single buffered']
    #allocation8 [shape = 'u8[8192]{0}', space=vmem, size = 0x2000, scoped, tag = 'input window, operand 3, single buffered']
    #allocation9 [shape = 's32[1]{0}', space=sflag, size = 0x4, scoped, tag = 'scoped memory for tpu_custom_call.1']
    #allocation10 [shape = 'u8[131072]{0}', space=vmem, size = 0x20000, scoped, tag = 'input window, operand 4, single buffered']
    #allocation11 [shape = 'u8[65536]{0}', space=vmem, size = 0x10000, scoped, tag = 'input window, operand 5, single buffered']
    #allocation12 [shape = 's32[1]{0}', space=sflag, size = 0x4, scoped, tag = 'scoped memory for tpu_custom_call.1']
    #allocation13 [shape = 'u8[8192]{0}', space=vmem, size = 0x2000, scoped, tag = 'input window, operand 6, single buffered']
    #allocation14 [shape = 'u8[8192]{0}', space=vmem, size = 0x2000, scoped, tag = 'output window, operand 0']
    %12 = vsyncpa [#allocation3], 0
    %s13 = scalar_lea.sflag [#allocation3], 1
    %14 = vsyncpa %s13, 0
    %15 = vsyncpa [#allocation6], 0
    %16 = vsyncpa [#allocation9], 0
    %17 = vsyncpa [#allocation12], 0
    %18 = vsyncpa [#allocation4], 0
    %s19 = scalar_lea.sflag [#allocation4], 1
    %20 = vsyncpa %s19, 0
    loop: start=0, step=1, limit=4
    $region2: #{tpu_custom_call.1} parent=1 // loop_pre_header
      _
    $region3: #{tpu_custom_call.1} parent=1 // loop_header
      %s22 = sphi 0, %s26
      %p23 = scmp.ge.s32.totalorder %s22, 4
      %s32 = sphi 0, %s34
      %s35 = sphi 0, %s32
      %s36 = sphi 0, %s35
      %s52 = sphi 0, %s36
      %s56 = sphi 0, %s56
      %s58 = sphi 0, %s56
      %s59 = sphi 0, %s58
      %s73 = sphi 0, %s59
      %s77 = sphi 0, %s77
      %s79 = sphi 0, %s77
      %s80 = sphi 0, %s79
      %s94 = sphi 0, %s80
      %s98 = sphi 0, %s98
      %s100 = sphi 0, %s98
      %s101 = sphi 0, %s100
      %s115 = sphi 0, %s101
      %s119 = sphi 0, %s119
      %s121 = sphi 0, %s119
      %s122 = sphi 0, %s121
      %s136 = sphi 0, %s122
      %s140 = sphi 0, %s140
      %s142 = sphi 0, %s140
      %s143 = sphi 0, %s142
      %s157 = sphi 0, %s143
      %s161 = sphi 0, %s161
      %s163 = sphi 0, %s161
      %s164 = sphi 0, %s163
      %s178 = sphi 0, %s164
      %s184 = sphi 0, %s186
      %s187 = sphi 0, %s184
      %s188 = sphi 0, %s187
      %s204 = sphi 0, %s188
    $region4: #{tpu_custom_call.1} parent=1 // loop_header_branch
      %25 = sbr.rel (%p23) target = $region8
    $region5: #{tpu_custom_call.1} parent=1 // loop_body
      %s27 = ssub.s32 %s22, 1
      %s28 = ssub.s32 %s22, 2
      %s29 = sadd.s32 %s22, 1
      %s30 = ssub.s32 %s22, %s29
      %p31 = scmp.eq.s32.totalorder %s30, 0
      %s33 = sadd.s32 %s32, 1
      %s34 = scalar_select %p31, %s32, %s33
      %p37 = pneg %p31
      %p38 = scmp.eq.s32.totalorder %s22, 1
      %p39 = por %p37, %p38
      %p40 = scmp.ne.s32.totalorder %s32, %s35
      %p41 = scmp.eq.s32.totalorder %s22, 0
      %p42 = por %p40, %p41
      %p43 = scmp.ne.s32.totalorder %s32, %s35
      %p44 = scmp.eq.s32.totalorder %s27, 1
      %p45 = por %p43, %p44
      %p46 = scmp.ne.s32.totalorder %s35, %s36
      %p47 = scmp.eq.s32.totalorder %s27, 0
      %p48 = por %p46, %p47
      %p49 = scmp.ne.s32.totalorder %s35, %s36
      %p50 = scmp.eq.s32.totalorder %s28, 1
      %p51 = por %p49, %p50
      %p53 = scmp.ne.s32.totalorder %s36, %s52
      %p54 = scmp.eq.s32.totalorder %s28, 0
      %p55 = por %p53, %p54
      %s57 = sadd.s32 %s56, 1
      %p60 = scmp.eq.s32.totalorder %s22, 1
      %p61 = scmp.ne.s32.totalorder %s56, %s58
      %p62 = scmp.eq.s32.totalorder %s22, 0
      %p63 = por %p61, %p62
      %p64 = scmp.ne.s32.totalorder %s56, %s58
      %p65 = scmp.eq.s32.totalorder %s27, 1
      %p66 = por %p64, %p65
      %p67 = scmp.ne.s32.totalorder %s58, %s59
      %p68 = scmp.eq.s32.totalorder %s27, 0
      %p69 = por %p67, %p68
      %p70 = scmp.ne.s32.totalorder %s58, %s59
      %p71 = scmp.eq.s32.totalorder %s28, 1
      %p72 = por %p70, %p71
      %p74 = scmp.ne.s32.totalorder %s59, %s73
      %p75 = scmp.eq.s32.totalorder %s28, 0
      %p76 = por %p74, %p75
      %s78 = sadd.s32 %s77, 1
      %p81 = scmp.eq.s32.totalorder %s22, 1
      %p82 = scmp.ne.s32.totalorder %s77, %s79
      %p83 = scmp.eq.s32.totalorder %s22, 0
      %p84 = por %p82, %p83
      %p85 = scmp.ne.s32.totalorder %s77, %s79
      %p86 = scmp.eq.s32.totalorder %s27, 1
      %p87 = por %p85, %p86
      %p88 = scmp.ne.s32.totalorder %s79, %s80
      %p89 = scmp.eq.s32.totalorder %s27, 0
      %p90 = por %p88, %p89
      %p91 = scmp.ne.s32.totalorder %s79, %s80
      %p92 = scmp.eq.s32.totalorder %s28, 1
      %p93 = por %p91, %p92
      %p95 = scmp.ne.s32.totalorder %s80, %s94
      %p96 = scmp.eq.s32.totalorder %s28, 0
      %p97 = por %p95, %p96
      %s99 = sadd.s32 %s98, 1
      %p102 = scmp.eq.s32.totalorder %s22, 1
      %p103 = scmp.ne.s32.totalorder %s98, %s100
      %p104 = scmp.eq.s32.totalorder %s22, 0
      %p105 = por %p103, %p104
      %p106 = scmp.ne.s32.totalorder %s98, %s100
      %p107 = scmp.eq.s32.totalorder %s27, 1
      %p108 = por %p106, %p107
      %p109 = scmp.ne.s32.totalorder %s100, %s101
      %p110 = scmp.eq.s32.totalorder %s27, 0
      %p111 = por %p109, %p110
      %p112 = scmp.ne.s32.totalorder %s100, %s101
      %p113 = scmp.eq.s32.totalorder %s28, 1
      %p114 = por %p112, %p113
      %p116 = scmp.ne.s32.totalorder %s101, %s115
      %p117 = scmp.eq.s32.totalorder %s28, 0
      %p118 = por %p116, %p117
      %s120 = sadd.s32 %s119, 1
      %p123 = scmp.eq.s32.totalorder %s22, 1
      %p124 = scmp.ne.s32.totalorder %s119, %s121
      %p125 = scmp.eq.s32.totalorder %s22, 0
      %p126 = por %p124, %p125
      %p127 = scmp.ne.s32.totalorder %s119, %s121
      %p128 = scmp.eq.s32.totalorder %s27, 1
      %p129 = por %p127, %p128
      %p130 = scmp.ne.s32.totalorder %s121, %s122
      %p131 = scmp.eq.s32.totalorder %s27, 0
      %p132 = por %p130, %p131
      %p133 = scmp.ne.s32.totalorder %s121, %s122
      %p134 = scmp.eq.s32.totalorder %s28, 1
      %p135 = por %p133, %p134
      %p137 = scmp.ne.s32.totalorder %s122, %s136
      %p138 = scmp.eq.s32.totalorder %s28, 0
      %p139 = por %p137, %p138
      %s141 = sadd.s32 %s140, 1
      %p144 = scmp.eq.s32.totalorder %s22, 1
      %p145 = scmp.ne.s32.totalorder %s140, %s142
      %p146 = scmp.eq.s32.totalorder %s22, 0
      %p147 = por %p145, %p146
      %p148 = scmp.ne.s32.totalorder %s140, %s142
      %p149 = scmp.eq.s32.totalorder %s27, 1
      %p150 = por %p148, %p149
      %p151 = scmp.ne.s32.totalorder %s142, %s143
      %p152 = scmp.eq.s32.totalorder %s27, 0
      %p153 = por %p151, %p152
      %p154 = scmp.ne.s32.totalorder %s142, %s143
      %p155 = scmp.eq.s32.totalorder %s28, 1
      %p156 = por %p154, %p155
      %p158 = scmp.ne.s32.totalorder %s143, %s157
      %p159 = scmp.eq.s32.totalorder %s28, 0
      %p160 = por %p158, %p159
      %s162 = sadd.s32 %s161, 1
      %p165 = scmp.eq.s32.totalorder %s22, 1
      %p166 = scmp.ne.s32.totalorder %s161, %s163
      %p167 = scmp.eq.s32.totalorder %s22, 0
      %p168 = por %p166, %p167
      %p169 = scmp.ne.s32.totalorder %s161, %s163
      %p170 = scmp.eq.s32.totalorder %s27, 1
      %p171 = por %p169, %p170
      %p172 = scmp.ne.s32.totalorder %s163, %s164
      %p173 = scmp.eq.s32.totalorder %s27, 0
      %p174 = por %p172, %p173
      %p175 = scmp.ne.s32.totalorder %s163, %s164
      %p176 = scmp.eq.s32.totalorder %s28, 1
      %p177 = por %p175, %p176
      %p179 = scmp.ne.s32.totalorder %s164, %s178
      %p180 = scmp.eq.s32.totalorder %s28, 0
      %p181 = por %p179, %p180
      %s182 = ssub.s32 %s22, %s29
      %p183 = scmp.eq.s32.totalorder %s182, 0
      %s185 = sadd.s32 %s184, 1
      %s186 = scalar_select %p183, %s184, %s185
      %p189 = pneg %p183
      %p190 = scmp.eq.s32.totalorder %s22, 1
      %p191 = por %p189, %p190
      %p192 = scmp.ne.s32.totalorder %s184, %s187
      %p193 = scmp.eq.s32.totalorder %s22, 0
      %p194 = por %p192, %p193
      %p195 = scmp.ne.s32.totalorder %s184, %s187
      %p196 = scmp.eq.s32.totalorder %s27, 1
      %p197 = por %p195, %p196
      %p198 = scmp.ne.s32.totalorder %s187, %s188
      %p199 = scmp.eq.s32.totalorder %s27, 0
      %p200 = por %p198, %p199
      %p201 = scmp.ne.s32.totalorder %s187, %s188
      %p202 = scmp.eq.s32.totalorder %s28, 1
      %p203 = por %p201, %p202
      %p205 = scmp.ne.s32.totalorder %s188, %s204
      %p206 = scmp.eq.s32.totalorder %s28, 0
      %p207 = por %p205, %p206
      %p208 = scmp.le.s32.totalorder 1, %s22
      %p209 = scmp.lt.s32.totalorder %s22, 3
      %p210 = pnand %p208, %p209
      %p211 = pneg %p210
      // Predicated region
      $region9: #{tpu_custom_call.1} parent=5 // pred_check
        _
      $region10: #{tpu_custom_call.1} parent=5 // pred_check_branch
        %213 = sbr.rel (%p210) target = $region12
      $region11: #{tpu_custom_call.1} parent=5 // pred_region
        %s214 = ssub.s32 %s22, 1
        // Predicated region
        $region13: #{tpu_custom_call.1} parent=11 // pred_check
          %p215 = pneg %p69
        $region14: #{tpu_custom_call.1} parent=11 // pred_check_branch
          %217 = sbr.rel (%p215) target = $region16
        $region15: #{tpu_custom_call.1} parent=11 // pred_region
          %s219 = ssub.s32 4096, 4096
          %220 = vsyncadd [#allocation6], %s219
          %s221 = sshll.u32 [#allocation5], 4
          %s222 = int_to_ptr.vmem [resolvable:$true] %s221
          %227 = dma.hbm_to_vmem [thread:$0]  %s1, 4096, %s222, [#allocation6], 256, 256, 16
        $region16: #{tpu_custom_call.1} parent=11 // pred_fallthru
          _
        // Predicated region
        $region17: #{tpu_custom_call.1} parent=11 // pred_check
          %p228 = pneg %p90
        $region18: #{tpu_custom_call.1} parent=11 // pred_check_branch
          %230 = sbr.rel (%p228) target = $region20
        $region19: #{tpu_custom_call.1} parent=11 // pred_region
          %s232 = ssub.s32 2048, 2048
          %233 = vsyncadd [#allocation6], %s232
          %s234 = sshll.u32 [#allocation7], 4
          %s235 = int_to_ptr.vmem [resolvable:$true] %s234
          %240 = dma.hbm_to_vmem [thread:$0]  %s2, 2048, %s235, [#allocation6], 128, 128, 8
        $region20: #{tpu_custom_call.1} parent=11 // pred_fallthru
          _
        // Predicated region
        $region21: #{tpu_custom_call.1} parent=11 // pred_check
          %p241 = pneg %p111
        $region22: #{tpu_custom_call.1} parent=11 // pred_check_branch
          %243 = sbr.rel (%p241) target = $region24
        $region23: #{tpu_custom_call.1} parent=11 // pred_region
          %s245 = ssub.s32 256, 256
          %246 = vsyncadd [#allocation9], %s245
          %s248 = sshll.u32 [#allocation8], 4
          %s249 = int_to_ptr.vmem [resolvable:$true] %s248
          %251 = dma.hbm_to_vmem [thread:$0]  %s3, 256, %s249, [#allocation9]
        $region24: #{tpu_custom_call.1} parent=11 // pred_fallthru
          _
        // Predicated region
        $region25: #{tpu_custom_call.1} parent=11 // pred_check
          %p252 = pneg %p132
        $region26: #{tpu_custom_call.1} parent=11 // pred_check_branch
          %254 = sbr.rel (%p252) target = $region28
        $region27: #{tpu_custom_call.1} parent=11 // pred_region
          %s256 = ssub.s32 4096, 4096
          %257 = vsyncadd [#allocation9], %s256
          %s258 = sshll.u32 [#allocation10], 4
          %s259 = int_to_ptr.vmem [resolvable:$true] %s258
          %264 = dma.hbm_to_vmem [thread:$0]  %s4, 4096, %s259, [#allocation9], 256, 256, 16
        $region28: #{tpu_custom_call.1} parent=11 // pred_fallthru
          _
        // Predicated region
        $region29: #{tpu_custom_call.1} parent=11 // pred_check
          %p265 = pneg %p153
        $region30: #{tpu_custom_call.1} parent=11 // pred_check_branch
          %267 = sbr.rel (%p265) target = $region32
        $region31: #{tpu_custom_call.1} parent=11 // pred_region
          %s269 = ssub.s32 2048, 2048
          %270 = vsyncadd [#allocation12], %s269
          %s271 = sshll.u32 [#allocation11], 4
          %s272 = int_to_ptr.vmem [resolvable:$true] %s271
          %277 = dma.hbm_to_vmem [thread:$0]  %s5, 2048, %s272, [#allocation12], 128, 128, 8
        $region32: #{tpu_custom_call.1} parent=11 // pred_fallthru
          _
        // Predicated region
        $region33: #{tpu_custom_call.1} parent=11 // pred_check
          %p278 = pneg %p174
        $region34: #{tpu_custom_call.1} parent=11 // pred_check_branch
          %280 = sbr.rel (%p278) target = $region36
        $region35: #{tpu_custom_call.1} parent=11 // pred_region
          %s282 = ssub.s32 256, 256
          %283 = vsyncadd [#allocation12], %s282
          %s285 = sshll.u32 [#allocation13], 4
          %s286 = int_to_ptr.vmem [resolvable:$true] %s285
          %288 = dma.hbm_to_vmem [thread:$0]  %s6, 256, %s286, [#allocation12]
        $region36: #{tpu_custom_call.1} parent=11 // pred_fallthru
          _
      $region12: #{tpu_custom_call.1} parent=5 // pred_fallthru
        _
      %p289 = scmp.lt.s32.totalorder %s22, 2
      // Predicated region
      $region37: #{tpu_custom_call.1} parent=5 // pred_check
        %p290 = pneg %p289
      $region38: #{tpu_custom_call.1} parent=5 // pred_check_branch
        %292 = sbr.rel (%p290) target = $region40
      $region39: #{tpu_custom_call.1} parent=5 // pred_region
        // Predicated region
        $region41: #{tpu_custom_call.1} parent=39 // pred_check
          %p293 = pneg %p42
        $region42: #{tpu_custom_call.1} parent=39 // pred_check_branch
          %295 = sbr.rel (%p293) target = $region44
        $region43: #{tpu_custom_call.1} parent=39 // pred_region
          %s296 = sand.u32 %s32, 1
          %s297 = scalar_lea.sflag [#allocation3], %s296
          %s298 = sand.u32 %s32, 1
          %s299 = smul.addr %s298, 8
          %s300 = scalar_lea.vmem [#allocation2], %s299
          %s302 = ssub.s32 128, 128
          %303 = vsyncadd %s297, %s302
          %s304 = smul.addr %s22, 128
          %s305 = scalar_lea.hbm %s0, %s304
          %s307 = sshll.u32 %s300, 4
          %s308 = int_to_ptr.vmem [resolvable:$true] %s307
          %310 = dma.hbm_to_vmem [thread:$0]  %s305, 128, %s308, %s297
        $region44: #{tpu_custom_call.1} parent=39 // pred_fallthru
          _
      $region40: #{tpu_custom_call.1} parent=5 // pred_fallthru
        _
      %p311 = scmp.le.s32.totalorder 1, %s22
      %p312 = scmp.lt.s32.totalorder %s22, 3
      %p313 = pnand %p311, %p312
      %p314 = pneg %p313
      // Predicated region
      $region45: #{tpu_custom_call.1} parent=5 // pred_check
        _
      $region46: #{tpu_custom_call.1} parent=5 // pred_check_branch
        %316 = sbr.rel (%p313) target = $region48
      $region47: #{tpu_custom_call.1} parent=5 // pred_region
        %s317 = ssub.s32 %s22, 1
        %s318 = sand.u32 %s35, 1
        %s319 = scalar_lea.sflag [#allocation3], %s318
        %s320 = sand.u32 %s35, 1
        %s321 = smul.addr %s320, 8
        %s322 = scalar_lea.vmem [#allocation2], %s321
        // Predicated region
        $region49: #{tpu_custom_call.1} parent=47 // pred_check
          %p323 = pneg %p48
        $region50: #{tpu_custom_call.1} parent=47 // pred_check_branch
          %325 = sbr.rel (%p323) target = $region52
        $region51: #{tpu_custom_call.1} parent=47 // pred_region
          %326 = dma.done %s319, 128
        $region52: #{tpu_custom_call.1} parent=47 // pred_fallthru
          _
        // Predicated region
        $region53: #{tpu_custom_call.1} parent=47 // pred_check
          %p327 = pneg %p69
        $region54: #{tpu_custom_call.1} parent=47 // pred_check_branch
          %329 = sbr.rel (%p327) target = $region56
        $region55: #{tpu_custom_call.1} parent=47 // pred_region
          %330 = dma.done [#allocation6], 4096
        $region56: #{tpu_custom_call.1} parent=47 // pred_fallthru
          _
        // Predicated region
        $region57: #{tpu_custom_call.1} parent=47 // pred_check
          %p331 = pneg %p90
        $region58: #{tpu_custom_call.1} parent=47 // pred_check_branch
          %333 = sbr.rel (%p331) target = $region60
        $region59: #{tpu_custom_call.1} parent=47 // pred_region
          %334 = dma.done [#allocation6], 2048
        $region60: #{tpu_custom_call.1} parent=47 // pred_fallthru
          _
        // Predicated region
        $region61: #{tpu_custom_call.1} parent=47 // pred_check
          %p335 = pneg %p111
        $region62: #{tpu_custom_call.1} parent=47 // pred_check_branch
          %337 = sbr.rel (%p335) target = $region64
        $region63: #{tpu_custom_call.1} parent=47 // pred_region
          %338 = dma.done [#allocation9], 256
        $region64: #{tpu_custom_call.1} parent=47 // pred_fallthru
          _
        // Predicated region
        $region65: #{tpu_custom_call.1} parent=47 // pred_check
          %p339 = pneg %p132
        $region66: #{tpu_custom_call.1} parent=47 // pred_check_branch
          %341 = sbr.rel (%p339) target = $region68
        $region67: #{tpu_custom_call.1} parent=47 // pred_region
          %342 = dma.done [#allocation9], 4096
        $region68: #{tpu_custom_call.1} parent=47 // pred_fallthru
          _
        // Predicated region
        $region69: #{tpu_custom_call.1} parent=47 // pred_check
          %p343 = pneg %p153
        $region70: #{tpu_custom_call.1} parent=47 // pred_check_branch
          %345 = sbr.rel (%p343) target = $region72
        $region71: #{tpu_custom_call.1} parent=47 // pred_region
          %346 = dma.done [#allocation12], 2048
        $region72: #{tpu_custom_call.1} parent=47 // pred_fallthru
          _
        // Predicated region
        $region73: #{tpu_custom_call.1} parent=47 // pred_check
          %p347 = pneg %p174
        $region74: #{tpu_custom_call.1} parent=47 // pred_check_branch
          %349 = sbr.rel (%p347) target = $region76
        $region75: #{tpu_custom_call.1} parent=47 // pred_region
          %350 = dma.done [#allocation12], 256
        $region76: #{tpu_custom_call.1} parent=47 // pred_fallthru
          _
        %s351 = sand.u32 %s35, 1
        %s352 = scalar_lea.sflag [#allocation3], %s351
        %s353 = sand.u32 %s35, 1
        %s354 = smul.addr %s353, 8
        %s355 = scalar_lea.vmem [#allocation2], %s354
        %p356 = pneg %p48
        %p357 = pneg %p45
        %p358 = pneg %p69
        %p359 = pneg %p66
        %p360 = pneg %p90
        %p361 = pneg %p87
        %p362 = pneg %p111
        %p363 = pneg %p108
        %p364 = pneg %p132
        %p365 = pneg %p129
        %p366 = pneg %p153
        %p367 = pneg %p150
        %p368 = pneg %p174
        %p369 = pneg %p171
        %p370 = pneg %p200
        %p371 = pneg %p197
        %s372 = sand.u32 %s187, 1
        %s373 = scalar_lea.sflag [#allocation4], %s372
        %s374 = sand.u32 %s187, 1
        %s375 = smul.addr %s374, 8
        %s376 = scalar_lea.vmem [#allocation14], %s375
        %v377 = vld [vmem:[%s322] sm:$0xff]
        %v378 = vld [vmem:[#allocation8] ss:$8 sm:$0x3]
        %v379 = vld [vmem:[#allocation8 + $0x1] ss:$0 sm:$0xff]
        %v380 = vld [vmem:[#allocation8 + $0x2] ss:$0 sm:$0xff]
        %v381 = vld [vmem:[#allocation8 + $0x3] ss:$0 sm:$0xff]
        %v382 = vld [vmem:[#allocation5] sm:$0xff]
        %v383 = vld [vmem:[#allocation5 + $0x8] sm:$0xff]
        %v384 = vld [vmem:[#allocation5 + $0x10] sm:$0xff]
        %v385 = vld [vmem:[#allocation5 + $0x18] sm:$0xff]
        %v386 = vld [vmem:[#allocation5 + $0x20] sm:$0xff]
        %v387 = vld [vmem:[#allocation5 + $0x28] sm:$0xff]
        %v388 = vld [vmem:[#allocation5 + $0x30] sm:$0xff]
        %v389 = vld [vmem:[#allocation5 + $0x38] sm:$0xff]
        %v390 = vld [vmem:[#allocation5 + $0x40] sm:$0xff]
        %v391 = vld [vmem:[#allocation5 + $0x48] sm:$0xff]
        %v392 = vld [vmem:[#allocation5 + $0x50] sm:$0xff]
        %v393 = vld [vmem:[#allocation5 + $0x58] sm:$0xff]
        %v394 = vld [vmem:[#allocation5 + $0x60] sm:$0xff]
        %v395 = vld [vmem:[#allocation5 + $0x68] sm:$0xff]
        %v396 = vld [vmem:[#allocation5 + $0x70] sm:$0xff]
        %v397 = vld [vmem:[#allocation5 + $0x78] sm:$0xff]
        %v398 = vld [vmem:[#allocation5 + $0x80] sm:$0xff]
        %v399 = vld [vmem:[#allocation5 + $0x88] sm:$0xff]
        %v400 = vld [vmem:[#allocation5 + $0x90] sm:$0xff]
        %v401 = vld [vmem:[#allocation5 + $0x98] sm:$0xff]
        %v402 = vld [vmem:[#allocation5 + $0xa0] sm:$0xff]
        %v403 = vld [vmem:[#allocation5 + $0xa8] sm:$0xff]
        %v404 = vld [vmem:[#allocation5 + $0xb0] sm:$0xff]
        %v405 = vld [vmem:[#allocation5 + $0xb8] sm:$0xff]
        %v406 = vld [vmem:[#allocation5 + $0xc0] sm:$0xff]
        %v407 = vld [vmem:[#allocation5 + $0xc8] sm:$0xff]
        %v408 = vld [vmem:[#allocation5 + $0xd0] sm:$0xff]
        %v409 = vld [vmem:[#allocation5 + $0xd8] sm:$0xff]
        %v410 = vld [vmem:[#allocation5 + $0xe0] sm:$0xff]
        %v411 = vld [vmem:[#allocation5 + $0xe8] sm:$0xff]
        %v412 = vld [vmem:[#allocation5 + $0xf0] sm:$0xff]
        %v413 = vld [vmem:[#allocation5 + $0xf8] sm:$0xff]
        %v415 = vlaneseq
        %v416 = vshrl.u32 %v415, 7
        %v417 = vsub.s32 0, %v416
        %v418 = vrot.slane %v378, %v417
        %v419 = vlaneseq
        %v420 = vshrl.u32 %v419, 7
        %v421 = vsub.s32 1, %v420
        %v422 = vrot.slane %v378, %v421
        %425 = vmatprep.subr.mxu0 %v413
        %426 = vmatpush1.msra.mxu0 %v412
        %427 = vmatprep.subr.mxu0 %v411
        %428 = vmatpush1.msra.mxu0 %v410
        %429 = vmatprep.subr.mxu0 %v409
        %430 = vmatpush1.msra.mxu0 %v408
        %431 = vmatprep.subr.mxu0 %v407
        %432 = vmatpush1.msra.mxu0 %v406
        %433 = vmatprep.subr.mxu0 %v405
        %434 = vmatpush1.msra.mxu0 %v404
        %435 = vmatprep.subr.mxu0 %v403
        %436 = vmatpush1.msra.mxu0 %v402
        %437 = vmatprep.subr.mxu0 %v401
        %438 = vmatpush1.msra.mxu0 %v400
        %439 = vmatprep.subr.mxu0 %v399
        %440 = vmatpush1.msra.mxu0 %v398
        %441 = vmatprep.subr.mxu0 %v397
        %442 = vmatpush1.msra.mxu0 %v396
        %443 = vmatprep.subr.mxu0 %v395
        %444 = vmatpush1.msra.mxu0 %v394
        %445 = vmatprep.subr.mxu0 %v393
        %446 = vmatpush1.msra.mxu0 %v392
        %447 = vmatprep.subr.mxu0 %v391
        %448 = vmatpush1.msra.mxu0 %v390
        %449 = vmatprep.subr.mxu0 %v389
        %450 = vmatpush1.msra.mxu0 %v388
        %451 = vmatprep.subr.mxu0 %v387
        %452 = vmatpush1.msra.mxu0 %v386
        %453 = vmatprep.subr.mxu0 %v385
        %454 = vmatpush1.msra.mxu0 %v384
        %455 = vmatprep.subr.mxu0 %v383
        %456 = vmatpush1.msra.mxu0 %v382
        %457 = vmatprep.subr.mxu0 0.0
        %458 = vmatpush2.msra.mxu0 0.0
        %459 = vmatprep.subr.mxu0 0.0
        %460 = vmatpush2.msra.mxu0 0.0
        %461 = vmatprep.subr.mxu0 0.0
        %462 = vmatpush2.msra.mxu0 0.0
        %463 = vmatprep.subr.mxu0 0.0
        %464 = vmatpush2.msra.mxu0 0.0
        %465 = vmatprep.subr.mxu0 0.0
        %466 = vmatpush2.msra.mxu0 0.0
        %467 = vmatprep.subr.mxu0 0.0
        %468 = vmatpush2.msra.mxu0 0.0
        %469 = vmatprep.subr.mxu0 0.0
        %470 = vmatpush2.msra.mxu0 0.0
        %471 = vmatprep.subr.mxu0 0.0
        %472 = vmatpush2.msra.mxu0 0.0
        %473 = vmatprep.subr.mxu0 0.0
        %474 = vmatpush2.msra.mxu0 0.0
        %475 = vmatprep.subr.mxu0 0.0
        %476 = vmatpush2.msra.mxu0 0.0
        %477 = vmatprep.subr.mxu0 0.0
        %478 = vmatpush2.msra.mxu0 0.0
        %479 = vmatprep.subr.mxu0 0.0
        %480 = vmatpush2.msra.mxu0 0.0
        %481 = vmatprep.subr.mxu0 0.0
        %482 = vmatpush2.msra.mxu0 0.0
        %483 = vmatprep.subr.mxu0 0.0
        %484 = vmatpush2.msra.mxu0 0.0
        %485 = vmatprep.subr.mxu0 0.0
        %486 = vmatpush2.msra.mxu0 0.0
        %487 = vmatprep.subr.mxu0 0.0
        %488 = vmatpush2.msra.mxu0 0.0
        %489 = vmatprep.mubr.f32.mxu0 0.0
        %490 = vmatmul.mubr.f32.gmra.mxu0 %v377
        %v491 = vpop.f32.mrf.mxu0
        %v492 = vadd.f32 %v418, %v491
        %v493 = vpop.f32.mrf.mxu0
        %v494 = vadd.f32 %v422, %v493
        %495 = vdwg.mxu0
        %v496 = vmax.f32 %v492, 0.0
        %v497 = vld [vmem:[#allocation7] sm:$0xff]
        %v498 = vld [vmem:[#allocation7 + $0x8] sm:$0xff]
        %v499 = vld [vmem:[#allocation7 + $0x10] sm:$0xff]
        %v500 = vld [vmem:[#allocation7 + $0x18] sm:$0xff]
        %v501 = vld [vmem:[#allocation7 + $0x20] sm:$0xff]
        %v502 = vld [vmem:[#allocation7 + $0x28] sm:$0xff]
        %v503 = vld [vmem:[#allocation7 + $0x30] sm:$0xff]
        %v504 = vld [vmem:[#allocation7 + $0x38] sm:$0xff]
        %v505 = vld [vmem:[#allocation7 + $0x40] sm:$0xff]
        %v506 = vld [vmem:[#allocation7 + $0x48] sm:$0xff]
        %v507 = vld [vmem:[#allocation7 + $0x50] sm:$0xff]
        %v508 = vld [vmem:[#allocation7 + $0x58] sm:$0xff]
        %v509 = vld [vmem:[#allocation7 + $0x60] sm:$0xff]
        %v510 = vld [vmem:[#allocation7 + $0x68] sm:$0xff]
        %v511 = vld [vmem:[#allocation7 + $0x70] sm:$0xff]
        %v512 = vld [vmem:[#allocation7 + $0x78] sm:$0xff]
        %513 = vmatprep.subr.mxu0 0.0
        %514 = vmatpush1.msra.mxu0 %v512
        %515 = vmatprep.subr.mxu0 0.0
        %516 = vmatpush1.msra.mxu0 %v511
        %517 = vmatprep.subr.mxu0 0.0
        %518 = vmatpush1.msra.mxu0 %v510
        %519 = vmatprep.subr.mxu0 0.0
        %520 = vmatpush1.msra.mxu0 %v509
        %521 = vmatprep.subr.mxu0 0.0
        %522 = vmatpush1.msra.mxu0 %v508
        %523 = vmatprep.subr.mxu0 0.0
        %524 = vmatpush1.msra.mxu0 %v507
        %525 = vmatprep.subr.mxu0 0.0
        %526 = vmatpush1.msra.mxu0 %v506
        %527 = vmatprep.subr.mxu0 0.0
        %528 = vmatpush1.msra.mxu0 %v505
        %529 = vmatprep.subr.mxu0 0.0
        %530 = vmatpush1.msra.mxu0 %v504
        %531 = vmatprep.subr.mxu0 0.0
        %532 = vmatpush1.msra.mxu0 %v503
        %533 = vmatprep.subr.mxu0 0.0
        %534 = vmatpush1.msra.mxu0 %v502
        %535 = vmatprep.subr.mxu0 0.0
        %536 = vmatpush1.msra.mxu0 %v501
        %537 = vmatprep.subr.mxu0 0.0
        %538 = vmatpush1.msra.mxu0 %v500
        %539 = vmatprep.subr.mxu0 0.0
        %540 = vmatpush1.msra.mxu0 %v499
        %541 = vmatprep.subr.mxu0 0.0
        %542 = vmatpush1.msra.mxu0 %v498
        %543 = vmatprep.subr.mxu0 0.0
        %544 = vmatpush1.msra.mxu0 %v497
        %545 = vmatprep.subr.mxu0 0.0
        %546 = vmatpush2.msra.mxu0 0.0
        %547 = vmatprep.subr.mxu0 0.0
        %548 = vmatpush2.msra.mxu0 0.0
        %549 = vmatprep.subr.mxu0 0.0
        %550 = vmatpush2.msra.mxu0 0.0
        %551 = vmatprep.subr.mxu0 0.0
        %552 = vmatpush2.msra.mxu0 0.0
        %553 = vmatprep.subr.mxu0 0.0
        %554 = vmatpush2.msra.mxu0 0.0
        %555 = vmatprep.subr.mxu0 0.0
        %556 = vmatpush2.msra.mxu0 0.0
        %557 = vmatprep.subr.mxu0 0.0
        %558 = vmatpush2.msra.mxu0 0.0
        %559 = vmatprep.subr.mxu0 0.0
        %560 = vmatpush2.msra.mxu0 0.0
        %561 = vmatprep.subr.mxu0 0.0
        %562 = vmatpush2.msra.mxu0 0.0
        %563 = vmatprep.subr.mxu0 0.0
        %564 = vmatpush2.msra.mxu0 0.0
        %565 = vmatprep.subr.mxu0 0.0
        %566 = vmatpush2.msra.mxu0 0.0
        %567 = vmatprep.subr.mxu0 0.0
        %568 = vmatpush2.msra.mxu0 0.0
        %569 = vmatprep.subr.mxu0 0.0
        %570 = vmatpush2.msra.mxu0 0.0
        %571 = vmatprep.subr.mxu0 0.0
        %572 = vmatpush2.msra.mxu0 0.0
        %573 = vmatprep.subr.mxu0 0.0
        %574 = vmatpush2.msra.mxu0 0.0
        %575 = vmatprep.subr.mxu0 0.0
        %576 = vmatpush2.msra.mxu0 0.0
        %577 = vmatprep.mubr.f32.mxu0 0.0
        %578 = vmatmul.mubr.f32.gmra.mxu0 %v496
        %v579 = vpop.f32.mrf.mxu0
        %v580 = vadd.f32 %v379, %v579
        %v581 = vpop.f32.mrf.mxu0
        %582 = vdwg.mxu0
        %v583 = vadd.f32 %v580, %v494
        %584 = vadd.xlane.f32.xlu0 %v583
        %v585 = vpop.xlane.xlu0 %584
        %v586 = vmul.f32 %v585, 0.020833334
        %v587 = vmul.f32 %v583, %v583
        %588 = vadd.xlane.f32.xlu0 %v587
        %v589 = vpop.xlane.xlu0 %588
        %v590 = vmul.f32 %v589, 0.020833334
        %v591 = vmul.f32 %v586, %v586
        %v592 = vsub.f32 %v590, %v591
        %v593 = vmax.f32 %v592, 0.0
        %v594 = vsub.f32 %v583, %v586
        %v595 = vadd.f32 %v593, 1e-05
        %v596 = vrsqrt.pop %v595
        %v597 = vmul.f32 %v594, %v596
        %v598 = vmul.f32 %v597, %v380
        %v599 = vadd.f32 %v598, %v381
        %v600 = vld [vmem:[#allocation13] ss:$8 sm:$0x3]
        %v601 = vld [vmem:[#allocation13 + $0x1] ss:$0 sm:$0xff]
        %v602 = vld [vmem:[#allocation13 + $0x2] ss:$0 sm:$0xff]
        %v603 = vld [vmem:[#allocation13 + $0x3] ss:$0 sm:$0xff]
        %v604 = vld [vmem:[#allocation10] sm:$0xff]
        %v605 = vld [vmem:[#allocation10 + $0x8] sm:$0xff]
        %v606 = vld [vmem:[#allocation10 + $0x10] sm:$0xff]
        %v607 = vld [vmem:[#allocation10 + $0x18] sm:$0xff]
        %v608 = vld [vmem:[#allocation10 + $0x20] sm:$0xff]
        %v609 = vld [vmem:[#allocation10 + $0x28] sm:$0xff]
        %v610 = vld [vmem:[#allocation10 + $0x30] sm:$0xff]
        %v611 = vld [vmem:[#allocation10 + $0x38] sm:$0xff]
        %v612 = vld [vmem:[#allocation10 + $0x40] sm:$0xff]
        %v613 = vld [vmem:[#allocation10 + $0x48] sm:$0xff]
        %v614 = vld [vmem:[#allocation10 + $0x50] sm:$0xff]
        %v615 = vld [vmem:[#allocation10 + $0x58] sm:$0xff]
        %v616 = vld [vmem:[#allocation10 + $0x60] sm:$0xff]
        %v617 = vld [vmem:[#allocation10 + $0x68] sm:$0xff]
        %v618 = vld [vmem:[#allocation10 + $0x70] sm:$0xff]
        %v619 = vld [vmem:[#allocation10 + $0x78] sm:$0xff]
        %v620 = vld [vmem:[#allocation10 + $0x80] sm:$0xff]
        %v621 = vld [vmem:[#allocation10 + $0x88] sm:$0xff]
        %v622 = vld [vmem:[#allocation10 + $0x90] sm:$0xff]
        %v623 = vld [vmem:[#allocation10 + $0x98] sm:$0xff]
        %v624 = vld [vmem:[#allocation10 + $0xa0] sm:$0xff]
        %v625 = vld [vmem:[#allocation10 + $0xa8] sm:$0xff]
        %v626 = vld [vmem:[#allocation10 + $0xb0] sm:$0xff]
        %v627 = vld [vmem:[#allocation10 + $0xb8] sm:$0xff]
        %v628 = vld [vmem:[#allocation10 + $0xc0] sm:$0xff]
        %v629 = vld [vmem:[#allocation10 + $0xc8] sm:$0xff]
        %v630 = vld [vmem:[#allocation10 + $0xd0] sm:$0xff]
        %v631 = vld [vmem:[#allocation10 + $0xd8] sm:$0xff]
        %v632 = vld [vmem:[#allocation10 + $0xe0] sm:$0xff]
        %v633 = vld [vmem:[#allocation10 + $0xe8] sm:$0xff]
        %v634 = vld [vmem:[#allocation10 + $0xf0] sm:$0xff]
        %v635 = vld [vmem:[#allocation10 + $0xf8] sm:$0xff]
        %v637 = vlaneseq
        %v638 = vshrl.u32 %v637, 7
        %v639 = vsub.s32 0, %v638
        %v640 = vrot.slane %v600, %v639
        %v641 = vlaneseq
        %v642 = vshrl.u32 %v641, 7
        %v643 = vsub.s32 1, %v642
        %v644 = vrot.slane %v600, %v643
        %647 = vmatprep.subr.mxu0 %v635
        %648 = vmatpush1.msra.mxu0 %v634
        %649 = vmatprep.subr.mxu0 %v633
        %650 = vmatpush1.msra.mxu0 %v632
        %651 = vmatprep.subr.mxu0 %v631
        %652 = vmatpush1.msra.mxu0 %v630
        %653 = vmatprep.subr.mxu0 %v629
        %654 = vmatpush1.msra.mxu0 %v628
        %655 = vmatprep.subr.mxu0 %v627
        %656 = vmatpush1.msra.mxu0 %v626
        %657 = vmatprep.subr.mxu0 %v625
        %658 = vmatpush1.msra.mxu0 %v624
        %659 = vmatprep.subr.mxu0 %v623
        %660 = vmatpush1.msra.mxu0 %v622
        %661 = vmatprep.subr.mxu0 %v621
        %662 = vmatpush1.msra.mxu0 %v620
        %663 = vmatprep.subr.mxu0 %v619
        %664 = vmatpush1.msra.mxu0 %v618
        %665 = vmatprep.subr.mxu0 %v617
        %666 = vmatpush1.msra.mxu0 %v616
        %667 = vmatprep.subr.mxu0 %v615
        %668 = vmatpush1.msra.mxu0 %v614
        %669 = vmatprep.subr.mxu0 %v613
        %670 = vmatpush1.msra.mxu0 %v612
        %671 = vmatprep.subr.mxu0 %v611
        %672 = vmatpush1.msra.mxu0 %v610
        %673 = vmatprep.subr.mxu0 %v609
        %674 = vmatpush1.msra.mxu0 %v608
        %675 = vmatprep.subr.mxu0 %v607
        %676 = vmatpush1.msra.mxu0 %v606
        %677 = vmatprep.subr.mxu0 %v605
        %678 = vmatpush1.msra.mxu0 %v604
        %679 = vmatprep.subr.mxu0 0.0
        %680 = vmatpush2.msra.mxu0 0.0
        %681 = vmatprep.subr.mxu0 0.0
        %682 = vmatpush2.msra.mxu0 0.0
        %683 = vmatprep.subr.mxu0 0.0
        %684 = vmatpush2.msra.mxu0 0.0
        %685 = vmatprep.subr.mxu0 0.0
        %686 = vmatpush2.msra.mxu0 0.0
        %687 = vmatprep.subr.mxu0 0.0
        %688 = vmatpush2.msra.mxu0 0.0
        %689 = vmatprep.subr.mxu0 0.0
        %690 = vmatpush2.msra.mxu0 0.0
        %691 = vmatprep.subr.mxu0 0.0
        %692 = vmatpush2.msra.mxu0 0.0
        %693 = vmatprep.subr.mxu0 0.0
        %694 = vmatpush2.msra.mxu0 0.0
        %695 = vmatprep.subr.mxu0 0.0
        %696 = vmatpush2.msra.mxu0 0.0
        %697 = vmatprep.subr.mxu0 0.0
        %698 = vmatpush2.msra.mxu0 0.0
        %699 = vmatprep.subr.mxu0 0.0
        %700 = vmatpush2.msra.mxu0 0.0
        %701 = vmatprep.subr.mxu0 0.0
        %702 = vmatpush2.msra.mxu0 0.0
        %703 = vmatprep.subr.mxu0 0.0
        %704 = vmatpush2.msra.mxu0 0.0
        %705 = vmatprep.subr.mxu0 0.0
        %706 = vmatpush2.msra.mxu0 0.0
        %707 = vmatprep.subr.mxu0 0.0
        %708 = vmatpush2.msra.mxu0 0.0
        %709 = vmatprep.subr.mxu0 0.0
        %710 = vmatpush2.msra.mxu0 0.0
        %711 = vmatprep.mubr.f32.mxu0 0.0
        %712 = vmatmul.mubr.f32.gmra.mxu0 %v599
        %v713 = vpop.f32.mrf.mxu0
        %v714 = vadd.f32 %v640, %v713
        %v715 = vpop.f32.mrf.mxu0
        %v716 = vadd.f32 %v644, %v715
        %717 = vdwg.mxu0
        %v718 = vmax.f32 %v714, 0.0
        %v719 = vld [vmem:[#allocation11] sm:$0xff]
        %v720 = vld [vmem:[#allocation11 + $0x8] sm:$0xff]
        %v721 = vld [vmem:[#allocation11 + $0x10] sm:$0xff]
        %v722 = vld [vmem:[#allocation11 + $0x18] sm:$0xff]
        %v723 = vld [vmem:[#allocation11 + $0x20] sm:$0xff]
        %v724 = vld [vmem:[#allocation11 + $0x28] sm:$0xff]
        %v725 = vld [vmem:[#allocation11 + $0x30] sm:$0xff]
        %v726 = vld [vmem:[#allocation11 + $0x38] sm:$0xff]
        %v727 = vld [vmem:[#allocation11 + $0x40] sm:$0xff]
        %v728 = vld [vmem:[#allocation11 + $0x48] sm:$0xff]
        %v729 = vld [vmem:[#allocation11 + $0x50] sm:$0xff]
        %v730 = vld [vmem:[#allocation11 + $0x58] sm:$0xff]
        %v731 = vld [vmem:[#allocation11 + $0x60] sm:$0xff]
        %v732 = vld [vmem:[#allocation11 + $0x68] sm:$0xff]
        %v733 = vld [vmem:[#allocation11 + $0x70] sm:$0xff]
        %v734 = vld [vmem:[#allocation11 + $0x78] sm:$0xff]
        %735 = vmatprep.subr.mxu0 0.0
        %736 = vmatpush1.msra.mxu0 %v734
        %737 = vmatprep.subr.mxu0 0.0
        %738 = vmatpush1.msra.mxu0 %v733
        %739 = vmatprep.subr.mxu0 0.0
        %740 = vmatpush1.msra.mxu0 %v732
        %741 = vmatprep.subr.mxu0 0.0
        %742 = vmatpush1.msra.mxu0 %v731
        %743 = vmatprep.subr.mxu0 0.0
        %744 = vmatpush1.msra.mxu0 %v730
        %745 = vmatprep.subr.mxu0 0.0
        %746 = vmatpush1.msra.mxu0 %v729
        %747 = vmatprep.subr.mxu0 0.0
        %748 = vmatpush1.msra.mxu0 %v728
        %749 = vmatprep.subr.mxu0 0.0
        %750 = vmatpush1.msra.mxu0 %v727
        %751 = vmatprep.subr.mxu0 0.0
        %752 = vmatpush1.msra.mxu0 %v726
        %753 = vmatprep.subr.mxu0 0.0
        %754 = vmatpush1.msra.mxu0 %v725
        %755 = vmatprep.subr.mxu0 0.0
        %756 = vmatpush1.msra.mxu0 %v724
        %757 = vmatprep.subr.mxu0 0.0
        %758 = vmatpush1.msra.mxu0 %v723
        %759 = vmatprep.subr.mxu0 0.0
        %760 = vmatpush1.msra.mxu0 %v722
        %761 = vmatprep.subr.mxu0 0.0
        %762 = vmatpush1.msra.mxu0 %v721
        %763 = vmatprep.subr.mxu0 0.0
        %764 = vmatpush1.msra.mxu0 %v720
        %765 = vmatprep.subr.mxu0 0.0
        %766 = vmatpush1.msra.mxu0 %v719
        %767 = vmatprep.subr.mxu0 0.0
        %768 = vmatpush2.msra.mxu0 0.0
        %769 = vmatprep.subr.mxu0 0.0
        %770 = vmatpush2.msra.mxu0 0.0
        %771 = vmatprep.subr.mxu0 0.0
        %772 = vmatpush2.msra.mxu0 0.0
        %773 = vmatprep.subr.mxu0 0.0
        %774 = vmatpush2.msra.mxu0 0.0
        %775 = vmatprep.subr.mxu0 0.0
        %776 = vmatpush2.msra.mxu0 0.0
        %777 = vmatprep.subr.mxu0 0.0
        %778 = vmatpush2.msra.mxu0 0.0
        %779 = vmatprep.subr.mxu0 0.0
        %780 = vmatpush2.msra.mxu0 0.0
        %781 = vmatprep.subr.mxu0 0.0
        %782 = vmatpush2.msra.mxu0 0.0
        %783 = vmatprep.subr.mxu0 0.0
        %784 = vmatpush2.msra.mxu0 0.0
        %785 = vmatprep.subr.mxu0 0.0
        %786 = vmatpush2.msra.mxu0 0.0
        %787 = vmatprep.subr.mxu0 0.0
        %788 = vmatpush2.msra.mxu0 0.0
        %789 = vmatprep.subr.mxu0 0.0
        %790 = vmatpush2.msra.mxu0 0.0
        %791 = vmatprep.subr.mxu0 0.0
        %792 = vmatpush2.msra.mxu0 0.0
        %793 = vmatprep.subr.mxu0 0.0
        %794 = vmatpush2.msra.mxu0 0.0
        %795 = vmatprep.subr.mxu0 0.0
        %796 = vmatpush2.msra.mxu0 0.0
        %797 = vmatprep.subr.mxu0 0.0
        %798 = vmatpush2.msra.mxu0 0.0
        %799 = vmatprep.mubr.f32.mxu0 0.0
        %800 = vmatmul.mubr.f32.gmra.mxu0 %v718
        %v801 = vpop.f32.mrf.mxu0
        %v802 = vadd.f32 %v601, %v801
        %v803 = vpop.f32.mrf.mxu0
        %804 = vdwg.mxu0
        %v805 = vadd.f32 %v802, %v716
        %806 = vadd.xlane.f32.xlu0 %v805
        %v807 = vpop.xlane.xlu0 %806
        %v808 = vmul.f32 %v807, 0.041666668
        %v809 = vmul.f32 %v805, %v805
        %810 = vadd.xlane.f32.xlu0 %v809
        %v811 = vpop.xlane.xlu0 %810
        %v812 = vmul.f32 %v811, 0.041666668
        %v813 = vmul.f32 %v808, %v808
        %v814 = vsub.f32 %v812, %v813
        %v815 = vmax.f32 %v814, 0.0
        %v816 = vsub.f32 %v805, %v808
        %v817 = vadd.f32 %v815, 1e-05
        %v818 = vrsqrt.pop %v817
        %v819 = vmul.f32 %v816, %v818
        %v820 = vmul.f32 %v819, %v602
        %v821 = vadd.f32 %v820, %v603
        %822 = vst [vmem:[%s376] sm:$0xff] %v821
        %s823 = sand.u32 %s187, 1
        %s824 = scalar_lea.sflag [#allocation4], %s823
        %s825 = sand.u32 %s187, 1
        %s826 = smul.addr %s825, 8
        %s827 = scalar_lea.vmem [#allocation14], %s826
        // Predicated region
        $region77: #{tpu_custom_call.1} parent=47 // pred_check
          %p828 = pneg %p197
        $region78: #{tpu_custom_call.1} parent=47 // pred_check_branch
          %830 = sbr.rel (%p828) target = $region80
        $region79: #{tpu_custom_call.1} parent=47 // pred_region
          %s832 = ssub.s32 128, 128
          %833 = vsyncadd %s824, %s832
          %s834 = smul.addr %s27, 128
          %s835 = scalar_lea.hbm %s7, %s834
          %s837 = sshll.u32 %s827, 4
          %s838 = int_to_ptr.vmem [resolvable:$true] %s837
          %840 = dma.vmem_to_hbm [thread:$0]  %s838, 128, %s835, %s824
        $region80: #{tpu_custom_call.1} parent=47 // pred_fallthru
          _
      $region48: #{tpu_custom_call.1} parent=5 // pred_fallthru
        _
      %p841 = scmp.le.s32.totalorder 2, %s22
      // Predicated region
      $region81: #{tpu_custom_call.1} parent=5 // pred_check
        %p842 = pneg %p841
      $region82: #{tpu_custom_call.1} parent=5 // pred_check_branch
        %844 = sbr.rel (%p842) target = $region84
      $region83: #{tpu_custom_call.1} parent=5 // pred_region
        %s845 = ssub.s32 %s22, 2
        // Predicated region
        $region85: #{tpu_custom_call.1} parent=83 // pred_check
          %p846 = pneg %p203
        $region86: #{tpu_custom_call.1} parent=83 // pred_check_branch
          %848 = sbr.rel (%p846) target = $region88
        $region87: #{tpu_custom_call.1} parent=83 // pred_region
          %s849 = sand.u32 %s188, 1
          %s850 = scalar_lea.sflag [#allocation4], %s849
          %s851 = sand.u32 %s188, 1
          %s852 = smul.addr %s851, 8
          %s853 = scalar_lea.vmem [#allocation14], %s852
          %854 = dma.done %s850, 128
        $region88: #{tpu_custom_call.1} parent=83 // pred_fallthru
          _
      $region84: #{tpu_custom_call.1} parent=5 // pred_fallthru
        _
    $region6: #{tpu_custom_call.1} parent=1 // loop_footer
      %s26 = sadd.s32 1, %s22
    $region7: #{tpu_custom_call.1} parent=1 // loop_footer_branch
      %21 = sbr.rel target = $region3
    $region8: #{tpu_custom_call.1} parent=1 // loop_exit
      _
    %855 = vsyncpa [#allocation3], 1
    %s856 = scalar_lea.sflag [#allocation3], 1
    %857 = vsyncpa %s856, 1
    %858 = vsyncpa [#allocation6], 1
    %859 = vsyncpa [#allocation9], 1
    %860 = vsyncpa [#allocation12], 1
    %861 = vsyncpa [#allocation4], 1
    %s862 = scalar_lea.sflag [#allocation4], 1
    %863 = vsyncpa %s862, 1

// kernel: tpu_custom_call.1
$region0: #{tpu_custom_call.1}
  #allocation0 [shape = 'u32[]', space=smem, size = 0x4, offset = 0x4, fixed_abs, tag = 'smem constant byte address 0x4 - core index']
  #allocation1 [shape = 'u32[144,128]{1,0:T(1,128)}', space=vmem, size = 0x12000, scoped, tag = 'internal scratch']
  %s0 = inlined_call_operand.hbm [shape: f32[16,128], index: 0, kind: input, shape index: {}]
  %s1 = inlined_call_operand.hbm [shape: f32[128,256], index: 1, kind: input, shape index: {}]
  %s2 = inlined_call_operand.hbm [shape: f32[128,128], index: 2, kind: input, shape index: {}]
  %s3 = inlined_call_operand.hbm [shape: f32[8,256], index: 3, kind: input, shape index: {}]
  %s4 = inlined_call_operand.hbm [shape: f32[128,256], index: 4, kind: input, shape index: {}]
  %s5 = inlined_call_operand.hbm [shape: f32[128,128], index: 5, kind: input, shape index: {}]
  %s6 = inlined_call_operand.hbm [shape: f32[8,256], index: 6, kind: input, shape index: {}]
  %s7 = inlined_call_operand.hbm [shape: f32[16,128], index: 7, kind: output, shape index: {}]
  %s8 = sld [smem:[#allocation0]]
  $region89: #{tpu_custom_call.1} parent=0
    _
  %s10 = ssub.s32 1, %s8
  %s11 = scalar_select 0, %s10, %s8
  $region1: #{tpu_custom_call.1} parent=0
    #allocation2 [shape = 'u8[8192]{0}', space=vmem, size = 0x2000, scoped, tag = 'input window, operand 0']
    #allocation3 [shape = 's32[2]{0}', space=sflag, size = 0x8, scoped, tag = 'scoped memory for tpu_custom_call.1']
    #allocation4 [shape = 's32[2]{0}', space=sflag, size = 0x8, scoped, tag = 'scoped memory for tpu_custom_call.1']
    #allocation5 [shape = 'u8[131072]{0}', space=vmem, size = 0x20000, scoped, tag = 'input window, operand 1, single buffered']
    #allocation6 [shape = 's32[1]{0}', space=sflag, size = 0x4, scoped, tag = 'scoped memory for tpu_custom_call.1']
    #allocation7 [shape = 'u8[65536]{0}', space=vmem, size = 0x10000, scoped, tag = 'input window, operand 2, single buffered']
    #allocation8 [shape = 'u8[8192]{0}', space=vmem, size = 0x2000, scoped, tag = 'input window, operand 3, single buffered']
    #allocation9 [shape = 's32[1]{0}', space=sflag, size = 0x4, scoped, tag = 'scoped memory for tpu_custom_call.1']
    #allocation10 [shape = 'u8[131072]{0}', space=vmem, size = 0x20000, scoped, tag = 'input window, operand 4, single buffered']
    #allocation11 [shape = 'u8[65536]{0}', space=vmem, size = 0x10000, scoped, tag = 'input window, operand 5, single buffered']
    #allocation12 [shape = 's32[1]{0}', space=sflag, size = 0x4, scoped, tag = 'scoped memory for tpu_custom_call.1']
    #allocation13 [shape = 'u8[8192]{0}', space=vmem, size = 0x2000, scoped, tag = 'input window, operand 6, single buffered']
    #allocation14 [shape = 'u8[8192]{0}', space=vmem, size = 0x2000, scoped, tag = 'output window, operand 0']
    %12 = vsyncpa [#allocation3], 0
    %s13 = scalar_lea.sflag [#allocation3], 1
    %14 = vsyncpa %s13, 0
    %15 = vsyncpa [#allocation6], 0
    %16 = vsyncpa [#allocation9], 0
    %17 = vsyncpa [#allocation12], 0
    %18 = vsyncpa [#allocation4], 0
    %s19 = scalar_lea.sflag [#allocation4], 1
    %20 = vsyncpa %s19, 0
    loop: start=0, step=1, limit=4
    $region2: #{tpu_custom_call.1} parent=1 // loop_pre_header
      _
    $region3: #{tpu_custom_call.1} parent=1 // loop_header
      %s22 = sphi 0, %s26
      %p23 = scmp.ge.s32.totalorder %s22, 4
      %s32 = sphi 0, %s34
      %s35 = sphi 0, %s32
      %s36 = sphi 0, %s35
      %s52 = sphi 0, %s36
      %s56 = sphi 0, %s56
      %s58 = sphi 0, %s56
      %s59 = sphi 0, %s58
      %s73 = sphi 0, %s59
      %s77 = sphi 0, %s77
      %s79 = sphi 0, %s77
      %s80 = sphi 0, %s79
      %s94 = sphi 0, %s80
      %s98 = sphi 0, %s98
      %s100 = sphi 0, %s98
      %s101 = sphi 0, %s100
      %s115 = sphi 0, %s101
      %s119 = sphi 0, %s119
      %s121 = sphi 0, %s119
      %s122 = sphi 0, %s121
      %s136 = sphi 0, %s122
      %s140 = sphi 0, %s140
      %s142 = sphi 0, %s140
      %s143 = sphi 0, %s142
      %s157 = sphi 0, %s143
      %s161 = sphi 0, %s161
      %s163 = sphi 0, %s161
      %s164 = sphi 0, %s163
      %s178 = sphi 0, %s164
      %s184 = sphi 0, %s186
      %s187 = sphi 0, %s184
      %s188 = sphi 0, %s187
      %s204 = sphi 0, %s188
    $region4: #{tpu_custom_call.1} parent=1 // loop_header_branch
      %25 = sbr.rel (%p23) target = $region8
    $region5: #{tpu_custom_call.1} parent=1 // loop_body
      %s27 = ssub.s32 %s22, 1
      %s28 = ssub.s32 %s22, 2
      %s29 = sadd.s32 %s22, 1
      %s30 = ssub.s32 %s22, %s29
      %p31 = scmp.eq.s32.totalorder %s30, 0
      %s33 = sadd.s32 %s32, 1
      %s34 = scalar_select %p31, %s32, %s33
      %p37 = pneg %p31
      %p38 = scmp.eq.s32.totalorder %s22, 1
      %p39 = por %p37, %p38
      %p40 = scmp.ne.s32.totalorder %s32, %s35
      %p41 = scmp.eq.s32.totalorder %s22, 0
      %p42 = por %p40, %p41
      %p43 = scmp.ne.s32.totalorder %s32, %s35
      %p44 = scmp.eq.s32.totalorder %s27, 1
      %p45 = por %p43, %p44
      %p46 = scmp.ne.s32.totalorder %s35, %s36
      %p47 = scmp.eq.s32.totalorder %s27, 0
      %p48 = por %p46, %p47
      %p49 = scmp.ne.s32.totalorder %s35, %s36
      %p50 = scmp.eq.s32.totalorder %s28, 1
      %p51 = por %p49, %p50
      %p53 = scmp.ne.s32.totalorder %s36, %s52
      %p54 = scmp.eq.s32.totalorder %s28, 0
      %p55 = por %p53, %p54
      %s57 = sadd.s32 %s56, 1
      %p60 = scmp.eq.s32.totalorder %s22, 1
      %p61 = scmp.ne.s32.totalorder %s56, %s58
      %p62 = scmp.eq.s32.totalorder %s22, 0
      %p63 = por %p61, %p62
      %p64 = scmp.ne.s32.totalorder %s56, %s58
      %p65 = scmp.eq.s32.totalorder %s27, 1
      %p66 = por %p64, %p65
      %p67 = scmp.ne.s32.totalorder %s58, %s59
      %p68 = scmp.eq.s32.totalorder %s27, 0
      %p69 = por %p67, %p68
      %p70 = scmp.ne.s32.totalorder %s58, %s59
      %p71 = scmp.eq.s32.totalorder %s28, 1
      %p72 = por %p70, %p71
      %p74 = scmp.ne.s32.totalorder %s59, %s73
      %p75 = scmp.eq.s32.totalorder %s28, 0
      %p76 = por %p74, %p75
      %s78 = sadd.s32 %s77, 1
      %p81 = scmp.eq.s32.totalorder %s22, 1
      %p82 = scmp.ne.s32.totalorder %s77, %s79
      %p83 = scmp.eq.s32.totalorder %s22, 0
      %p84 = por %p82, %p83
      %p85 = scmp.ne.s32.totalorder %s77, %s79
      %p86 = scmp.eq.s32.totalorder %s27, 1
      %p87 = por %p85, %p86
      %p88 = scmp.ne.s32.totalorder %s79, %s80
      %p89 = scmp.eq.s32.totalorder %s27, 0
      %p90 = por %p88, %p89
      %p91 = scmp.ne.s32.totalorder %s79, %s80
      %p92 = scmp.eq.s32.totalorder %s28, 1
      %p93 = por %p91, %p92
      %p95 = scmp.ne.s32.totalorder %s80, %s94
      %p96 = scmp.eq.s32.totalorder %s28, 0
      %p97 = por %p95, %p96
      %s99 = sadd.s32 %s98, 1
      %p102 = scmp.eq.s32.totalorder %s22, 1
      %p103 = scmp.ne.s32.totalorder %s98, %s100
      %p104 = scmp.eq.s32.totalorder %s22, 0
      %p105 = por %p103, %p104
      %p106 = scmp.ne.s32.totalorder %s98, %s100
      %p107 = scmp.eq.s32.totalorder %s27, 1
      %p108 = por %p106, %p107
      %p109 = scmp.ne.s32.totalorder %s100, %s101
      %p110 = scmp.eq.s32.totalorder %s27, 0
      %p111 = por %p109, %p110
      %p112 = scmp.ne.s32.totalorder %s100, %s101
      %p113 = scmp.eq.s32.totalorder %s28, 1
      %p114 = por %p112, %p113
      %p116 = scmp.ne.s32.totalorder %s101, %s115
      %p117 = scmp.eq.s32.totalorder %s28, 0
      %p118 = por %p116, %p117
      %s120 = sadd.s32 %s119, 1
      %p123 = scmp.eq.s32.totalorder %s22, 1
      %p124 = scmp.ne.s32.totalorder %s119, %s121
      %p125 = scmp.eq.s32.totalorder %s22, 0
      %p126 = por %p124, %p125
      %p127 = scmp.ne.s32.totalorder %s119, %s121
      %p128 = scmp.eq.s32.totalorder %s27, 1
      %p129 = por %p127, %p128
      %p130 = scmp.ne.s32.totalorder %s121, %s122
      %p131 = scmp.eq.s32.totalorder %s27, 0
      %p132 = por %p130, %p131
      %p133 = scmp.ne.s32.totalorder %s121, %s122
      %p134 = scmp.eq.s32.totalorder %s28, 1
      %p135 = por %p133, %p134
      %p137 = scmp.ne.s32.totalorder %s122, %s136
      %p138 = scmp.eq.s32.totalorder %s28, 0
      %p139 = por %p137, %p138
      %s141 = sadd.s32 %s140, 1
      %p144 = scmp.eq.s32.totalorder %s22, 1
      %p145 = scmp.ne.s32.totalorder %s140, %s142
      %p146 = scmp.eq.s32.totalorder %s22, 0
      %p147 = por %p145, %p146
      %p148 = scmp.ne.s32.totalorder %s140, %s142
      %p149 = scmp.eq.s32.totalorder %s27, 1
      %p150 = por %p148, %p149
      %p151 = scmp.ne.s32.totalorder %s142, %s143
      %p152 = scmp.eq.s32.totalorder %s27, 0
      %p153 = por %p151, %p152
      %p154 = scmp.ne.s32.totalorder %s142, %s143
      %p155 = scmp.eq.s32.totalorder %s28, 1
      %p156 = por %p154, %p155
      %p158 = scmp.ne.s32.totalorder %s143, %s157
      %p159 = scmp.eq.s32.totalorder %s28, 0
      %p160 = por %p158, %p159
      %s162 = sadd.s32 %s161, 1
      %p165 = scmp.eq.s32.totalorder %s22, 1
      %p166 = scmp.ne.s32.totalorder %s161, %s163
      %p167 = scmp.eq.s32.totalorder %s22, 0
      %p168 = por %p166, %p167
      %p169 = scmp.ne.s32.totalorder %s161, %s163
      %p170 = scmp.eq.s32.totalorder %s27, 1
      %p171 = por %p169, %p170
      %p172 = scmp.ne.s32.totalorder %s163, %s164
      %p173 = scmp.eq.s32.totalorder %s27, 0
      %p174 = por %p172, %p173
      %p175 = scmp.ne.s32.totalorder %s163, %s164
      %p176 = scmp.eq.s32.totalorder %s28, 1
      %p177 = por %p175, %p176
      %p179 = scmp.ne.s32.totalorder %s164, %s178
      %p180 = scmp.eq.s32.totalorder %s28, 0
      %p181 = por %p179, %p180
      %s182 = ssub.s32 %s22, %s29
      %p183 = scmp.eq.s32.totalorder %s182, 0
      %s185 = sadd.s32 %s184, 1
      %s186 = scalar_select %p183, %s184, %s185
      %p189 = pneg %p183
      %p190 = scmp.eq.s32.totalorder %s22, 1
      %p191 = por %p189, %p190
      %p192 = scmp.ne.s32.totalorder %s184, %s187
      %p193 = scmp.eq.s32.totalorder %s22, 0
      %p194 = por %p192, %p193
      %p195 = scmp.ne.s32.totalorder %s184, %s187
      %p196 = scmp.eq.s32.totalorder %s27, 1
      %p197 = por %p195, %p196
      %p198 = scmp.ne.s32.totalorder %s187, %s188
      %p199 = scmp.eq.s32.totalorder %s27, 0
      %p200 = por %p198, %p199
      %p201 = scmp.ne.s32.totalorder %s187, %s188
      %p202 = scmp.eq.s32.totalorder %s28, 1
      %p203 = por %p201, %p202
      %p205 = scmp.ne.s32.totalorder %s188, %s204
      %p206 = scmp.eq.s32.totalorder %s28, 0
      %p207 = por %p205, %p206
      %p208 = scmp.le.s32.totalorder 1, %s22
      %p209 = scmp.lt.s32.totalorder %s22, 3
      %p210 = pnand %p208, %p209
      %p211 = pneg %p210
      // Predicated region
      $region9: #{tpu_custom_call.1} parent=5 // pred_check
        _
      $region10: #{tpu_custom_call.1} parent=5 // pred_check_branch
        %213 = sbr.rel (%p210) target = $region12
      $region11: #{tpu_custom_call.1} parent=5 // pred_region
        %s214 = ssub.s32 %s22, 1
        // Predicated region
        $region13: #{tpu_custom_call.1} parent=11 // pred_check
          %p215 = pneg %p69
        $region14: #{tpu_custom_call.1} parent=11 // pred_check_branch
          %217 = sbr.rel (%p215) target = $region16
        $region15: #{tpu_custom_call.1} parent=11 // pred_region
          %s219 = ssub.s32 4096, 4096
          %220 = vsyncadd [#allocation6], %s219
          %s221 = sshll.u32 [#allocation5], 4
          %s222 = int_to_ptr.vmem [resolvable:$true] %s221
          %227 = dma.hbm_to_vmem [thread:$0]  %s1, 4096, %s222, [#allocation6], 256, 256, 16
        $region16: #{tpu_custom_call.1} parent=11 // pred_fallthru
          _
        // Predicated region
        $region17: #{tpu_custom_call.1} parent=11 // pred_check
          %p228 = pneg %p90
        $region18: #{tpu_custom_call.1} parent=11 // pred_check_branch
          %230 = sbr.rel (%p228) target = $region20
        $region19: #{tpu_custom_call.1} parent=11 // pred_region
          %s232 = ssub.s32 2048, 2048
          %233 = vsyncadd [#allocation6], %s232
          %s234 = sshll.u32 [#allocation7], 4
          %s235 = int_to_ptr.vmem [resolvable:$true] %s234
          %240 = dma.hbm_to_vmem [thread:$0]  %s2, 2048, %s235, [#allocation6], 128, 128, 8
        $region20: #{tpu_custom_call.1} parent=11 // pred_fallthru
          _
        // Predicated region
        $region21: #{tpu_custom_call.1} parent=11 // pred_check
          %p241 = pneg %p111
        $region22: #{tpu_custom_call.1} parent=11 // pred_check_branch
          %243 = sbr.rel (%p241) target = $region24
        $region23: #{tpu_custom_call.1} parent=11 // pred_region
          %s245 = ssub.s32 256, 256
          %246 = vsyncadd [#allocation9], %s245
          %s248 = sshll.u32 [#allocation8], 4
          %s249 = int_to_ptr.vmem [resolvable:$true] %s248
          %251 = dma.hbm_to_vmem [thread:$0]  %s3, 256, %s249, [#allocation9]
        $region24: #{tpu_custom_call.1} parent=11 // pred_fallthru
          _
        // Predicated region
        $region25: #{tpu_custom_call.1} parent=11 // pred_check
          %p252 = pneg %p132
        $region26: #{tpu_custom_call.1} parent=11 // pred_check_branch
          %254 = sbr.rel (%p252) target = $region28
        $region27: #{tpu_custom_call.1} parent=11 // pred_region
          %s256 = ssub.s32 4096, 4096
          %257 = vsyncadd [#allocation9], %s256
          %s258 = sshll.u32 [#allocation10], 4
          %s259 = int_to_ptr.vmem [resolvable:$true] %s258
          %264 = dma.hbm_to_vmem [thread:$0]  %s4, 4096, %s259, [#allocation9], 256, 256, 16
        $region28: #{tpu_custom_call.1} parent=11 // pred_fallthru
          _
        // Predicated region
        $region29: #{tpu_custom_call.1} parent=11 // pred_check
          %p265 = pneg %p153
        $region30: #{tpu_custom_call.1} parent=11 // pred_check_branch
          %267 = sbr.rel (%p265) target = $region32
        $region31: #{tpu_custom_call.1} parent=11 // pred_region
          %s269 = ssub.s32 2048, 2048
          %270 = vsyncadd [#allocation12], %s269
          %s271 = sshll.u32 [#allocation11], 4
          %s272 = int_to_ptr.vmem [resolvable:$true] %s271
          %277 = dma.hbm_to_vmem [thread:$0]  %s5, 2048, %s272, [#allocation12], 128, 128, 8
        $region32: #{tpu_custom_call.1} parent=11 // pred_fallthru
          _
        // Predicated region
        $region33: #{tpu_custom_call.1} parent=11 // pred_check
          %p278 = pneg %p174
        $region34: #{tpu_custom_call.1} parent=11 // pred_check_branch
          %280 = sbr.rel (%p278) target = $region36
        $region35: #{tpu_custom_call.1} parent=11 // pred_region
          %s282 = ssub.s32 256, 256
          %283 = vsyncadd [#allocation12], %s282
          %s285 = sshll.u32 [#allocation13], 4
          %s286 = int_to_ptr.vmem [resolvable:$true] %s285
          %288 = dma.hbm_to_vmem [thread:$0]  %s6, 256, %s286, [#allocation12]
        $region36: #{tpu_custom_call.1} parent=11 // pred_fallthru
          _
      $region12: #{tpu_custom_call.1} parent=5 // pred_fallthru
        _
      %p289 = scmp.lt.s32.totalorder %s22, 2
      // Predicated region
      $region37: #{tpu_custom_call.1} parent=5 // pred_check
        %p290 = pneg %p289
      $region38: #{tpu_custom_call.1} parent=5 // pred_check_branch
        %292 = sbr.rel (%p290) target = $region40
      $region39: #{tpu_custom_call.1} parent=5 // pred_region
        // Predicated region
        $region41: #{tpu_custom_call.1} parent=39 // pred_check
          %p293 = pneg %p42
        $region42: #{tpu_custom_call.1} parent=39 // pred_check_branch
          %295 = sbr.rel (%p293) target = $region44
        $region43: #{tpu_custom_call.1} parent=39 // pred_region
          %s296 = sand.u32 %s32, 1
          %s297 = scalar_lea.sflag [#allocation3], %s296
          %s298 = sand.u32 %s32, 1
          %s299 = smul.addr %s298, 8
          %s300 = scalar_lea.vmem [#allocation2], %s299
          %s302 = ssub.s32 128, 128
          %303 = vsyncadd %s297, %s302
          %s304 = smul.addr %s22, 128
          %s305 = scalar_lea.hbm %s0, %s304
          %s307 = sshll.u32 %s300, 4
          %s308 = int_to_ptr.vmem [resolvable:$true] %s307
          %310 = dma.hbm_to_vmem [thread:$0]  %s305, 128, %s308, %s297
        $region44: #{tpu_custom_call.1} parent=39 // pred_fallthru
          _
      $region40: #{tpu_custom_call.1} parent=5 // pred_fallthru
        _
      %p311 = scmp.le.s32.totalorder 1, %s22
      %p312 = scmp.lt.s32.totalorder %s22, 3
      %p313 = pnand %p311, %p312
      %p314 = pneg %p313
      // Predicated region
      $region45: #{tpu_custom_call.1} parent=5 // pred_check
        _
      $region46: #{tpu_custom_call.1} parent=5 // pred_check_branch
        %316 = sbr.rel (%p313) target = $region48
      $region47: #{tpu_custom_call.1} parent=5 // pred_region
        %s317 = ssub.s32 %s22, 1
        %s318 = sand.u32 %s35, 1
        %s319 = scalar_lea.sflag [#allocation3], %s318
        %s320 = sand.u32 %s35, 1
        %s321 = smul.addr %s320, 8
        %s322 = scalar_lea.vmem [#allocation2], %s321
        // Predicated region
        $region49: #{tpu_custom_call.1} parent=47 // pred_check
          %p323 = pneg %p48
        $region50: #{tpu_custom_call.1} parent=47 // pred_check_branch
          %325 = sbr.rel (%p323) target = $region52
        $region51: #{tpu_custom_call.1} parent=47 // pred_region
          %326 = dma.done %s319, 128
        $region52: #{tpu_custom_call.1} parent=47 // pred_fallthru
          _
        // Predicated region
        $region53: #{tpu_custom_call.1} parent=47 // pred_check
          %p327 = pneg %p69
        $region54: #{tpu_custom_call.1} parent=47 // pred_check_branch
          %329 = sbr.rel (%p327) target = $region56
        $region55: #{tpu_custom_call.1} parent=47 // pred_region
          %330 = dma.done [#allocation6], 4096
        $region56: #{tpu_custom_call.1} parent=47 // pred_fallthru
          _
        // Predicated region
        $region57: #{tpu_custom_call.1} parent=47 // pred_check
          %p331 = pneg %p90
        $region58: #{tpu_custom_call.1} parent=47 // pred_check_branch
          %333 = sbr.rel (%p331) target = $region60
        $region59: #{tpu_custom_call.1} parent=47 // pred_region
          %334 = dma.done [#allocation6], 2048
        $region60: #{tpu_custom_call.1} parent=47 // pred_fallthru
          _
        // Predicated region
        $region61: #{tpu_custom_call.1} parent=47 // pred_check
          %p335 = pneg %p111
        $region62: #{tpu_custom_call.1} parent=47 // pred_check_branch
          %337 = sbr.rel (%p335) target = $region64
        $region63: #{tpu_custom_call.1} parent=47 // pred_region
          %338 = dma.done [#allocation9], 256
        $region64: #{tpu_custom_call.1} parent=47 // pred_fallthru
          _
        // Predicated region
        $region65: #{tpu_custom_call.1} parent=47 // pred_check
          %p339 = pneg %p132
        $region66: #{tpu_custom_call.1} parent=47 // pred_check_branch
          %341 = sbr.rel (%p339) target = $region68
        $region67: #{tpu_custom_call.1} parent=47 // pred_region
          %342 = dma.done [#allocation9], 4096
        $region68: #{tpu_custom_call.1} parent=47 // pred_fallthru
          _
        // Predicated region
        $region69: #{tpu_custom_call.1} parent=47 // pred_check
          %p343 = pneg %p153
        $region70: #{tpu_custom_call.1} parent=47 // pred_check_branch
          %345 = sbr.rel (%p343) target = $region72
        $region71: #{tpu_custom_call.1} parent=47 // pred_region
          %346 = dma.done [#allocation12], 2048
        $region72: #{tpu_custom_call.1} parent=47 // pred_fallthru
          _
        // Predicated region
        $region73: #{tpu_custom_call.1} parent=47 // pred_check
          %p347 = pneg %p174
        $region74: #{tpu_custom_call.1} parent=47 // pred_check_branch
          %349 = sbr.rel (%p347) target = $region76
        $region75: #{tpu_custom_call.1} parent=47 // pred_region
          %350 = dma.done [#allocation12], 256
        $region76: #{tpu_custom_call.1} parent=47 // pred_fallthru
          _
        %s351 = sand.u32 %s35, 1
        %s352 = scalar_lea.sflag [#allocation3], %s351
        %s353 = sand.u32 %s35, 1
        %s354 = smul.addr %s353, 8
        %s355 = scalar_lea.vmem [#allocation2], %s354
        %p356 = pneg %p48
        %p357 = pneg %p45
        %p358 = pneg %p69
        %p359 = pneg %p66
        %p360 = pneg %p90
        %p361 = pneg %p87
        %p362 = pneg %p111
        %p363 = pneg %p108
        %p364 = pneg %p132
        %p365 = pneg %p129
        %p366 = pneg %p153
        %p367 = pneg %p150
        %p368 = pneg %p174
        %p369 = pneg %p171
        %p370 = pneg %p200
        %p371 = pneg %p197
        %s372 = sand.u32 %s187, 1
        %s373 = scalar_lea.sflag [#allocation4], %s372
        %s374 = sand.u32 %s187, 1
        %s375 = smul.addr %s374, 8
        %s376 = scalar_lea.vmem [#allocation14], %s375
        %v377 = vld [vmem:[%s322] sm:$0xff]
        %v378 = vld [vmem:[#allocation8] ss:$8 sm:$0x3]
        %v379 = vld [vmem:[#allocation8 + $0x1] ss:$0 sm:$0xff]
        %v380 = vld [vmem:[#allocation8 + $0x2] ss:$0 sm:$0xff]
        %v381 = vld [vmem:[#allocation8 + $0x3] ss:$0 sm:$0xff]
        %v382 = vld [vmem:[#allocation5] sm:$0xff]
        %v383 = vld [vmem:[#allocation5 + $0x8] sm:$0xff]
        %v384 = vld [vmem:[#allocation5 + $0x10] sm:$0xff]
        %v385 = vld [vmem:[#allocation5 + $0x18] sm:$0xff]
        %v386 = vld [vmem:[#allocation5 + $0x20] sm:$0xff]
        %v387 = vld [vmem:[#allocation5 + $0x28] sm:$0xff]
        %v388 = vld [vmem:[#allocation5 + $0x30] sm:$0xff]
        %v389 = vld [vmem:[#allocation5 + $0x38] sm:$0xff]
        %v390 = vld [vmem:[#allocation5 + $0x40] sm:$0xff]
        %v391 = vld [vmem:[#allocation5 + $0x48] sm:$0xff]
        %v392 = vld [vmem:[#allocation5 + $0x50] sm:$0xff]
        %v393 = vld [vmem:[#allocation5 + $0x58] sm:$0xff]
        %v394 = vld [vmem:[#allocation5 + $0x60] sm:$0xff]
        %v395 = vld [vmem:[#allocation5 + $0x68] sm:$0xff]
        %v396 = vld [vmem:[#allocation5 + $0x70] sm:$0xff]
        %v397 = vld [vmem:[#allocation5 + $0x78] sm:$0xff]
        %v398 = vld [vmem:[#allocation5 + $0x80] sm:$0xff]
        %v399 = vld [vmem:[#allocation5 + $0x88] sm:$0xff]
        %v400 = vld [vmem:[#allocation5 + $0x90] sm:$0xff]
        %v401 = vld [vmem:[#allocation5 + $0x98] sm:$0xff]
        %v402 = vld [vmem:[#allocation5 + $0xa0] sm:$0xff]
        %v403 = vld [vmem:[#allocation5 + $0xa8] sm:$0xff]
        %v404 = vld [vmem:[#allocation5 + $0xb0] sm:$0xff]
        %v405 = vld [vmem:[#allocation5 + $0xb8] sm:$0xff]
        %v406 = vld [vmem:[#allocation5 + $0xc0] sm:$0xff]
        %v407 = vld [vmem:[#allocation5 + $0xc8] sm:$0xff]
        %v408 = vld [vmem:[#allocation5 + $0xd0] sm:$0xff]
        %v409 = vld [vmem:[#allocation5 + $0xd8] sm:$0xff]
        %v410 = vld [vmem:[#allocation5 + $0xe0] sm:$0xff]
        %v411 = vld [vmem:[#allocation5 + $0xe8] sm:$0xff]
        %v412 = vld [vmem:[#allocation5 + $0xf0] sm:$0xff]
        %v413 = vld [vmem:[#allocation5 + $0xf8] sm:$0xff]
        %v415 = vlaneseq
        %v416 = vshrl.u32 %v415, 7
        %v417 = vsub.s32 0, %v416
        %v418 = vrot.slane %v378, %v417
        %v419 = vlaneseq
        %v420 = vshrl.u32 %v419, 7
        %v421 = vsub.s32 1, %v420
        %v422 = vrot.slane %v378, %v421
        %425 = vmatprep.subr.mxu0 %v413
        %426 = vmatpush1.msra.mxu0 %v412
        %427 = vmatprep.subr.mxu0 %v411
        %428 = vmatpush1.msra.mxu0 %v410
        %429 = vmatprep.subr.mxu0 %v409
        %430 = vmatpush1.msra.mxu0 %v408
        %431 = vmatprep.subr.mxu0 %v407
        %432 = vmatpush1.msra.mxu0 %v406
        %433 = vmatprep.subr.mxu0 %v405
        %434 = vmatpush1.msra.mxu0 %v404
        %435 = vmatprep.subr.mxu0 %v403
        %436 = vmatpush1.msra.mxu0 %v402
        %437 = vmatprep.subr.mxu0 %v401
        %438 = vmatpush1.msra.mxu0 %v400
        %439 = vmatprep.subr.mxu0 %v399
        %440 = vmatpush1.msra.mxu0 %v398
        %441 = vmatprep.subr.mxu0 %v397
        %442 = vmatpush1.msra.mxu0 %v396
        %443 = vmatprep.subr.mxu0 %v395
        %444 = vmatpush1.msra.mxu0 %v394
        %445 = vmatprep.subr.mxu0 %v393
        %446 = vmatpush1.msra.mxu0 %v392
        %447 = vmatprep.subr.mxu0 %v391
        %448 = vmatpush1.msra.mxu0 %v390
        %449 = vmatprep.subr.mxu0 %v389
        %450 = vmatpush1.msra.mxu0 %v388
        %451 = vmatprep.subr.mxu0 %v387
        %452 = vmatpush1.msra.mxu0 %v386
        %453 = vmatprep.subr.mxu0 %v385
        %454 = vmatpush1.msra.mxu0 %v384
        %455 = vmatprep.subr.mxu0 %v383
        %456 = vmatpush1.msra.mxu0 %v382
        %457 = vmatprep.subr.mxu0 0.0
        %458 = vmatpush2.msra.mxu0 0.0
        %459 = vmatprep.subr.mxu0 0.0
        %460 = vmatpush2.msra.mxu0 0.0
        %461 = vmatprep.subr.mxu0 0.0
        %462 = vmatpush2.msra.mxu0 0.0
        %463 = vmatprep.subr.mxu0 0.0
        %464 = vmatpush2.msra.mxu0 0.0
        %465 = vmatprep.subr.mxu0 0.0
        %466 = vmatpush2.msra.mxu0 0.0
        %467 = vmatprep.subr.mxu0 0.0
        %468 = vmatpush2.msra.mxu0 0.0
        %469 = vmatprep.subr.mxu0 0.0
        %470 = vmatpush2.msra.mxu0 0.0
        %471 = vmatprep.subr.mxu0 0.0
        %472 = vmatpush2.msra.mxu0 0.0
        %473 = vmatprep.subr.mxu0 0.0
        %474 = vmatpush2.msra.mxu0 0.0
        %475 = vmatprep.subr.mxu0 0.0
        %476 = vmatpush2.msra.mxu0 0.0
        %477 = vmatprep.subr.mxu0 0.0
        %478 = vmatpush2.msra.mxu0 0.0
        %479 = vmatprep.subr.mxu0 0.0
        %480 = vmatpush2.msra.mxu0 0.0
        %481 = vmatprep.subr.mxu0 0.0
        %482 = vmatpush2.msra.mxu0 0.0
        %483 = vmatprep.subr.mxu0 0.0
        %484 = vmatpush2.msra.mxu0 0.0
        %485 = vmatprep.subr.mxu0 0.0
        %486 = vmatpush2.msra.mxu0 0.0
        %487 = vmatprep.subr.mxu0 0.0
        %488 = vmatpush2.msra.mxu0 0.0
        %489 = vmatprep.mubr.f32.mxu0 0.0
        %490 = vmatmul.mubr.f32.gmra.mxu0 %v377
        %v491 = vpop.f32.mrf.mxu0
        %v492 = vadd.f32 %v418, %v491
        %v493 = vpop.f32.mrf.mxu0
        %v494 = vadd.f32 %v422, %v493
        %495 = vdwg.mxu0
        %v496 = vmax.f32 %v492, 0.0
        %v497 = vld [vmem:[#allocation7] sm:$0xff]
        %v498 = vld [vmem:[#allocation7 + $0x8] sm:$0xff]
        %v499 = vld [vmem:[#allocation7 + $0x10] sm:$0xff]
        %v500 = vld [vmem:[#allocation7 + $0x18] sm:$0xff]
        %v501 = vld [vmem:[#allocation7 + $0x20] sm:$0xff]
        %v502 = vld [vmem:[#allocation7 + $0x28] sm:$0xff]
        %v503 = vld [vmem:[#allocation7 + $0x30] sm:$0xff]
        %v504 = vld [vmem:[#allocation7 + $0x38] sm:$0xff]
        %v505 = vld [vmem:[#allocation7 + $0x40] sm:$0xff]
        %v506 = vld [vmem:[#allocation7 + $0x48] sm:$0xff]
        %v507 = vld [vmem:[#allocation7 + $0x50] sm:$0xff]
        %v508 = vld [vmem:[#allocation7 + $0x58] sm:$0xff]
        %v509 = vld [vmem:[#allocation7 + $0x60] sm:$0xff]
        %v510 = vld [vmem:[#allocation7 + $0x68] sm:$0xff]
        %v511 = vld [vmem:[#allocation7 + $0x70] sm:$0xff]
        %v512 = vld [vmem:[#allocation7 + $0x78] sm:$0xff]
        %513 = vmatprep.subr.mxu0 0.0
        %514 = vmatpush1.msra.mxu0 %v512
        %515 = vmatprep.subr.mxu0 0.0
        %516 = vmatpush1.msra.mxu0 %v511
        %517 = vmatprep.subr.mxu0 0.0
        %518 = vmatpush1.msra.mxu0 %v510
        %519 = vmatprep.subr.mxu0 0.0
        %520 = vmatpush1.msra.mxu0 %v509
        %521 = vmatprep.subr.mxu0 0.0
        %522 = vmatpush1.msra.mxu0 %v508
        %523 = vmatprep.subr.mxu0 0.0
        %524 = vmatpush1.msra.mxu0 %v507
        %525 = vmatprep.subr.mxu0 0.0
        %526 = vmatpush1.msra.mxu0 %v506
        %527 = vmatprep.subr.mxu0 0.0
        %528 = vmatpush1.msra.mxu0 %v505
        %529 = vmatprep.subr.mxu0 0.0
        %530 = vmatpush1.msra.mxu0 %v504
        %531 = vmatprep.subr.mxu0 0.0
        %532 = vmatpush1.msra.mxu0 %v503
        %533 = vmatprep.subr.mxu0 0.0
        %534 = vmatpush1.msra.mxu0 %v502
        %535 = vmatprep.subr.mxu0 0.0
        %536 = vmatpush1.msra.mxu0 %v501
        %537 = vmatprep.subr.mxu0 0.0
        %538 = vmatpush1.msra.mxu0 %v500
        %539 = vmatprep.subr.mxu0 0.0
        %540 = vmatpush1.msra.mxu0 %v499
        %541 = vmatprep.subr.mxu0 0.0
        %542 = vmatpush1.msra.mxu0 %v498
        %543 = vmatprep.subr.mxu0 0.0
        %544 = vmatpush1.msra.mxu0 %v497
        %545 = vmatprep.subr.mxu0 0.0
        %546 = vmatpush2.msra.mxu0 0.0
        %547 = vmatprep.subr.mxu0 0.0
        %548 = vmatpush2.msra.mxu0 0.0
        %549 = vmatprep.subr.mxu0 0.0
        %550 = vmatpush2.msra.mxu0 0.0
        %551 = vmatprep.subr.mxu0 0.0
        %552 = vmatpush2.msra.mxu0 0.0
        %553 = vmatprep.subr.mxu0 0.0
        %554 = vmatpush2.msra.mxu0 0.0
        %555 = vmatprep.subr.mxu0 0.0
        %556 = vmatpush2.msra.mxu0 0.0
        %557 = vmatprep.subr.mxu0 0.0
        %558 = vmatpush2.msra.mxu0 0.0
        %559 = vmatprep.subr.mxu0 0.0
        %560 = vmatpush2.msra.mxu0 0.0
        %561 = vmatprep.subr.mxu0 0.0
        %562 = vmatpush2.msra.mxu0 0.0
        %563 = vmatprep.subr.mxu0 0.0
        %564 = vmatpush2.msra.mxu0 0.0
        %565 = vmatprep.subr.mxu0 0.0
        %566 = vmatpush2.msra.mxu0 0.0
        %567 = vmatprep.subr.mxu0 0.0
        %568 = vmatpush2.msra.mxu0 0.0
        %569 = vmatprep.subr.mxu0 0.0
        %570 = vmatpush2.msra.mxu0 0.0
        %571 = vmatprep.subr.mxu0 0.0
        %572 = vmatpush2.msra.mxu0 0.0
        %573 = vmatprep.subr.mxu0 0.0
        %574 = vmatpush2.msra.mxu0 0.0
        %575 = vmatprep.subr.mxu0 0.0
        %576 = vmatpush2.msra.mxu0 0.0
        %577 = vmatprep.mubr.f32.mxu0 0.0
        %578 = vmatmul.mubr.f32.gmra.mxu0 %v496
        %v579 = vpop.f32.mrf.mxu0
        %v580 = vadd.f32 %v379, %v579
        %v581 = vpop.f32.mrf.mxu0
        %582 = vdwg.mxu0
        %v583 = vadd.f32 %v580, %v494
        %584 = vadd.xlane.f32.xlu0 %v583
        %v585 = vpop.xlane.xlu0 %584
        %v586 = vmul.f32 %v585, 0.020833334
        %v587 = vmul.f32 %v583, %v583
        %588 = vadd.xlane.f32.xlu0 %v587
        %v589 = vpop.xlane.xlu0 %588
        %v590 = vmul.f32 %v589, 0.020833334
        %v591 = vmul.f32 %v586, %v586
        %v592 = vsub.f32 %v590, %v591
        %v593 = vmax.f32 %v592, 0.0
        %v594 = vsub.f32 %v583, %v586
        %v595 = vadd.f32 %v593, 1e-05
        %v596 = vrsqrt.pop %v595
        %v597 = vmul.f32 %v594, %v596
        %v598 = vmul.f32 %v597, %v380
        %v599 = vadd.f32 %v598, %v381
        %v600 = vld [vmem:[#allocation13] ss:$8 sm:$0x3]
        %v601 = vld [vmem:[#allocation13 + $0x1] ss:$0 sm:$0xff]
        %v602 = vld [vmem:[#allocation13 + $0x2] ss:$0 sm:$0xff]
        %v603 = vld [vmem:[#allocation13 + $0x3] ss:$0 sm:$0xff]
        %v604 = vld [vmem:[#allocation10] sm:$0xff]
        %v605 = vld [vmem:[#allocation10 + $0x8] sm:$0xff]
        %v606 = vld [vmem:[#allocation10 + $0x10] sm:$0xff]
        %v607 = vld [vmem:[#allocation10 + $0x18] sm:$0xff]
        %v608 = vld [vmem:[#allocation10 + $0x20] sm:$0xff]
        %v609 = vld [vmem:[#allocation10 + $0x28] sm:$0xff]
        %v610 = vld [vmem:[#allocation10 + $0x30] sm:$0xff]
        %v611 = vld [vmem:[#allocation10 + $0x38] sm:$0xff]
        %v612 = vld [vmem:[#allocation10 + $0x40] sm:$0xff]
        %v613 = vld [vmem:[#allocation10 + $0x48] sm:$0xff]
        %v614 = vld [vmem:[#allocation10 + $0x50] sm:$0xff]
        %v615 = vld [vmem:[#allocation10 + $0x58] sm:$0xff]
        %v616 = vld [vmem:[#allocation10 + $0x60] sm:$0xff]
        %v617 = vld [vmem:[#allocation10 + $0x68] sm:$0xff]
        %v618 = vld [vmem:[#allocation10 + $0x70] sm:$0xff]
        %v619 = vld [vmem:[#allocation10 + $0x78] sm:$0xff]
        %v620 = vld [vmem:[#allocation10 + $0x80] sm:$0xff]
        %v621 = vld [vmem:[#allocation10 + $0x88] sm:$0xff]
        %v622 = vld [vmem:[#allocation10 + $0x90] sm:$0xff]
        %v623 = vld [vmem:[#allocation10 + $0x98] sm:$0xff]
        %v624 = vld [vmem:[#allocation10 + $0xa0] sm:$0xff]
        %v625 = vld [vmem:[#allocation10 + $0xa8] sm:$0xff]
        %v626 = vld [vmem:[#allocation10 + $0xb0] sm:$0xff]
        %v627 = vld [vmem:[#allocation10 + $0xb8] sm:$0xff]
        %v628 = vld [vmem:[#allocation10 + $0xc0] sm:$0xff]
        %v629 = vld [vmem:[#allocation10 + $0xc8] sm:$0xff]
        %v630 = vld [vmem:[#allocation10 + $0xd0] sm:$0xff]
        %v631 = vld [vmem:[#allocation10 + $0xd8] sm:$0xff]
        %v632 = vld [vmem:[#allocation10 + $0xe0] sm:$0xff]
        %v633 = vld [vmem:[#allocation10 + $0xe8] sm:$0xff]
        %v634 = vld [vmem:[#allocation10 + $0xf0] sm:$0xff]
        %v635 = vld [vmem:[#allocation10 + $0xf8] sm:$0xff]
        %v637 = vlaneseq
        %v638 = vshrl.u32 %v637, 7
        %v639 = vsub.s32 0, %v638
        %v640 = vrot.slane %v600, %v639
        %v641 = vlaneseq
        %v642 = vshrl.u32 %v641, 7
        %v643 = vsub.s32 1, %v642
        %v644 = vrot.slane %v600, %v643
        %647 = vmatprep.subr.mxu0 %v635
        %648 = vmatpush1.msra.mxu0 %v634
        %649 = vmatprep.subr.mxu0 %v633
        %650 = vmatpush1.msra.mxu0 %v632
        %651 = vmatprep.subr.mxu0 %v631
        %652 = vmatpush1.msra.mxu0 %v630
        %653 = vmatprep.subr.mxu0 %v629
        %654 = vmatpush1.msra.mxu0 %v628
        %655 = vmatprep.subr.mxu0 %v627
        %656 = vmatpush1.msra.mxu0 %v626
        %657 = vmatprep.subr.mxu0 %v625
        %658 = vmatpush1.msra.mxu0 %v624
        %659 = vmatprep.subr.mxu0 %v623
        %660 = vmatpush1.msra.mxu0 %v622
        %661 = vmatprep.subr.mxu0 %v621
        %662 = vmatpush1.msra.mxu0 %v620
        %663 = vmatprep.subr.mxu0 %v619
        %664 = vmatpush1.msra.mxu0 %v618
        %665 = vmatprep.subr.mxu0 %v617
        %666 = vmatpush1.msra.mxu0 %v616
        %667 = vmatprep.subr.mxu0 %v615
        %668 = vmatpush1.msra.mxu0 %v614
        %669 = vmatprep.subr.mxu0 %v613
        %670 = vmatpush1.msra.mxu0 %v612
        %671 = vmatprep.subr.mxu0 %v611
        %672 = vmatpush1.msra.mxu0 %v610
        %673 = vmatprep.subr.mxu0 %v609
        %674 = vmatpush1.msra.mxu0 %v608
        %675 = vmatprep.subr.mxu0 %v607
        %676 = vmatpush1.msra.mxu0 %v606
        %677 = vmatprep.subr.mxu0 %v605
        %678 = vmatpush1.msra.mxu0 %v604
        %679 = vmatprep.subr.mxu0 0.0
        %680 = vmatpush2.msra.mxu0 0.0
        %681 = vmatprep.subr.mxu0 0.0
        %682 = vmatpush2.msra.mxu0 0.0
        %683 = vmatprep.subr.mxu0 0.0
        %684 = vmatpush2.msra.mxu0 0.0
        %685 = vmatprep.subr.mxu0 0.0
        %686 = vmatpush2.msra.mxu0 0.0
        %687 = vmatprep.subr.mxu0 0.0
        %688 = vmatpush2.msra.mxu0 0.0
        %689 = vmatprep.subr.mxu0 0.0
        %690 = vmatpush2.msra.mxu0 0.0
        %691 = vmatprep.subr.mxu0 0.0
        %692 = vmatpush2.msra.mxu0 0.0
        %693 = vmatprep.subr.mxu0 0.0
        %694 = vmatpush2.msra.mxu0 0.0
        %695 = vmatprep.subr.mxu0 0.0
        %696 = vmatpush2.msra.mxu0 0.0
        %697 = vmatprep.subr.mxu0 0.0
        %698 = vmatpush2.msra.mxu0 0.0
        %699 = vmatprep.subr.mxu0 0.0
        %700 = vmatpush2.msra.mxu0 0.0
        %701 = vmatprep.subr.mxu0 0.0
        %702 = vmatpush2.msra.mxu0 0.0
        %703 = vmatprep.subr.mxu0 0.0
        %704 = vmatpush2.msra.mxu0 0.0
        %705 = vmatprep.subr.mxu0 0.0
        %706 = vmatpush2.msra.mxu0 0.0
        %707 = vmatprep.subr.mxu0 0.0
        %708 = vmatpush2.msra.mxu0 0.0
        %709 = vmatprep.subr.mxu0 0.0
        %710 = vmatpush2.msra.mxu0 0.0
        %711 = vmatprep.mubr.f32.mxu0 0.0
        %712 = vmatmul.mubr.f32.gmra.mxu0 %v599
        %v713 = vpop.f32.mrf.mxu0
        %v714 = vadd.f32 %v640, %v713
        %v715 = vpop.f32.mrf.mxu0
        %v716 = vadd.f32 %v644, %v715
        %717 = vdwg.mxu0
        %v718 = vmax.f32 %v714, 0.0
        %v719 = vld [vmem:[#allocation11] sm:$0xff]
        %v720 = vld [vmem:[#allocation11 + $0x8] sm:$0xff]
        %v721 = vld [vmem:[#allocation11 + $0x10] sm:$0xff]
        %v722 = vld [vmem:[#allocation11 + $0x18] sm:$0xff]
        %v723 = vld [vmem:[#allocation11 + $0x20] sm:$0xff]
        %v724 = vld [vmem:[#allocation11 + $0x28] sm:$0xff]
        %v725 = vld [vmem:[#allocation11 + $0x30] sm:$0xff]
        %v726 = vld [vmem:[#allocation11 + $0x38] sm:$0xff]
        %v727 = vld [vmem:[#allocation11 + $0x40] sm:$0xff]
        %v728 = vld [vmem:[#allocation11 + $0x48] sm:$0xff]
        %v729 = vld [vmem:[#allocation11 + $0x50] sm:$0xff]
        %v730 = vld [vmem:[#allocation11 + $0x58] sm:$0xff]
        %v731 = vld [vmem:[#allocation11 + $0x60] sm:$0xff]
        %v732 = vld [vmem:[#allocation11 + $0x68] sm:$0xff]
        %v733 = vld [vmem:[#allocation11 + $0x70] sm:$0xff]
        %v734 = vld [vmem:[#allocation11 + $0x78] sm:$0xff]
        %735 = vmatprep.subr.mxu0 0.0
        %736 = vmatpush1.msra.mxu0 %v734
        %737 = vmatprep.subr.mxu0 0.0
        %738 = vmatpush1.msra.mxu0 %v733
        %739 = vmatprep.subr.mxu0 0.0
        %740 = vmatpush1.msra.mxu0 %v732
        %741 = vmatprep.subr.mxu0 0.0
        %742 = vmatpush1.msra.mxu0 %v731
        %743 = vmatprep.subr.mxu0 0.0
        %744 = vmatpush1.msra.mxu0 %v730
        %745 = vmatprep.subr.mxu0 0.0
        %746 = vmatpush1.msra.mxu0 %v729
        %747 = vmatprep.subr.mxu0 0.0
        %748 = vmatpush1.msra.mxu0 %v728
        %749 = vmatprep.subr.mxu0 0.0
        %750 = vmatpush1.msra.mxu0 %v727
        %751 = vmatprep.subr.mxu0 0.0
        %752 = vmatpush1.msra.mxu0 %v726
        %753 = vmatprep.subr.mxu0 0.0
        %754 = vmatpush1.msra.mxu0 %v725
        %755 = vmatprep.subr.mxu0 0.0
        %756 = vmatpush1.msra.mxu0 %v724
        %757 = vmatprep.subr.mxu0 0.0
        %758 = vmatpush1.msra.mxu0 %v723
        %759 = vmatprep.subr.mxu0 0.0
        %760 = vmatpush1.msra.mxu0 %v722
        %761 = vmatprep.subr.mxu0 0.0
        %762 = vmatpush1.msra.mxu0 %v721
        %763 = vmatprep.subr.mxu0 0.0
        %764 = vmatpush1.msra.mxu0 %v720
        %765 = vmatprep.subr.mxu0 0.0
        %766 = vmatpush1.msra.mxu0 %v719
        %767 = vmatprep.subr.mxu0 0.0
        %768 = vmatpush2.msra.mxu0 0.0
        %769 = vmatprep.subr.mxu0 0.0
        %770 = vmatpush2.msra.mxu0 0.0
        %771 = vmatprep.subr.mxu0 0.0
        %772 = vmatpush2.msra.mxu0 0.0
        %773 = vmatprep.subr.mxu0 0.0
        %774 = vmatpush2.msra.mxu0 0.0
        %775 = vmatprep.subr.mxu0 0.0
        %776 = vmatpush2.msra.mxu0 0.0
        %777 = vmatprep.subr.mxu0 0.0
        %778 = vmatpush2.msra.mxu0 0.0
        %779 = vmatprep.subr.mxu0 0.0
        %780 = vmatpush2.msra.mxu0 0.0
        %781 = vmatprep.subr.mxu0 0.0
        %782 = vmatpush2.msra.mxu0 0.0
        %783 = vmatprep.subr.mxu0 0.0
        %784 = vmatpush2.msra.mxu0 0.0
        %785 = vmatprep.subr.mxu0 0.0
        %786 = vmatpush2.msra.mxu0 0.0
        %787 = vmatprep.subr.mxu0 0.0
        %788 = vmatpush2.msra.mxu0 0.0
        %789 = vmatprep.subr.mxu0 0.0
        %790 = vmatpush2.msra.mxu0 0.0
        %791 = vmatprep.subr.mxu0 0.0
        %792 = vmatpush2.msra.mxu0 0.0
        %793 = vmatprep.subr.mxu0 0.0
        %794 = vmatpush2.msra.mxu0 0.0
        %795 = vmatprep.subr.mxu0 0.0
        %796 = vmatpush2.msra.mxu0 0.0
        %797 = vmatprep.subr.mxu0 0.0
        %798 = vmatpush2.msra.mxu0 0.0
        %799 = vmatprep.mubr.f32.mxu0 0.0
        %800 = vmatmul.mubr.f32.gmra.mxu0 %v718
        %v801 = vpop.f32.mrf.mxu0
        %v802 = vadd.f32 %v601, %v801
        %v803 = vpop.f32.mrf.mxu0
        %804 = vdwg.mxu0
        %v805 = vadd.f32 %v802, %v716
        %806 = vadd.xlane.f32.xlu0 %v805
        %v807 = vpop.xlane.xlu0 %806
        %v808 = vmul.f32 %v807, 0.041666668
        %v809 = vmul.f32 %v805, %v805
        %810 = vadd.xlane.f32.xlu0 %v809
        %v811 = vpop.xlane.xlu0 %810
        %v812 = vmul.f32 %v811, 0.041666668
        %v813 = vmul.f32 %v808, %v808
        %v814 = vsub.f32 %v812, %v813
        %v815 = vmax.f32 %v814, 0.0
        %v816 = vsub.f32 %v805, %v808
        %v817 = vadd.f32 %v815, 1e-05
        %v818 = vrsqrt.pop %v817
        %v819 = vmul.f32 %v816, %v818
        %v820 = vmul.f32 %v819, %v602
        %v821 = vadd.f32 %v820, %v603
        %822 = vst [vmem:[%s376] sm:$0xff] %v821
        %s823 = sand.u32 %s187, 1
        %s824 = scalar_lea.sflag [#allocation4], %s823
        %s825 = sand.u32 %s187, 1
        %s826 = smul.addr %s825, 8
        %s827 = scalar_lea.vmem [#allocation14], %s826
        // Predicated region
        $region77: #{tpu_custom_call.1} parent=47 // pred_check
          %p828 = pneg %p197
        $region78: #{tpu_custom_call.1} parent=47 // pred_check_branch
          %830 = sbr.rel (%p828) target = $region80
        $region79: #{tpu_custom_call.1} parent=47 // pred_region
          %s832 = ssub.s32 128, 128
          %833 = vsyncadd %s824, %s832
          %s834 = smul.addr %s27, 128
          %s835 = scalar_lea.hbm %s7, %s834
          %s837 = sshll.u32 %s827, 4
          %s838 = int_to_ptr.vmem [resolvable:$true] %s837
          %840 = dma.vmem_to_hbm [thread:$0]  %s838, 128, %s835, %s824
        $region80: #{tpu_custom_call.1} parent=47 // pred_fallthru
          _
      $region48: #{tpu_custom_call.1} parent=5 // pred_fallthru
        _
      %p841 = scmp.le.s32.totalorder 2, %s22
      // Predicated region
      $region81: #{tpu_custom_call.1} parent=5 // pred_check
        %p842 = pneg %p841
      $region82: #{tpu_custom_call.1} parent=5 // pred_check_branch
        %844 = sbr.rel (%p842) target = $region84
      $region83: #{tpu_custom_call.1} parent=5 // pred_region
        %s845 = ssub.s32 %s22, 2
        // Predicated region
        $region85: #{tpu_custom_call.1} parent=83 // pred_check
          %p846 = pneg %p203
        $region86: #{tpu_custom_call.1} parent=83 // pred_check_branch
          %848 = sbr.rel (%p846) target = $region88
        $region87: #{tpu_custom_call.1} parent=83 // pred_region
          %s849 = sand.u32 %s188, 1
          %s850 = scalar_lea.sflag [#allocation4], %s849
          %s851 = sand.u32 %s188, 1
          %s852 = smul.addr %s851, 8
          %s853 = scalar_lea.vmem [#allocation14], %s852
          %854 = dma.done %s850, 128
        $region88: #{tpu_custom_call.1} parent=83 // pred_fallthru
          _
      $region84: #{tpu_custom_call.1} parent=5 // pred_fallthru
        _
    $region6: #{tpu_custom_call.1} parent=1 // loop_footer
      %s26 = sadd.s32 1, %s22
    $region7: #{tpu_custom_call.1} parent=1 // loop_footer_branch
      %21 = sbr.rel target = $region3
    $region8: #{tpu_custom_call.1} parent=1 // loop_exit
      _
    %855 = vsyncpa [#allocation3], 1
    %s856 = scalar_lea.sflag [#allocation3], 1
    %857 = vsyncpa %s856, 1
    %858 = vsyncpa [#allocation6], 1
    %859 = vsyncpa [#allocation9], 1
    %860 = vsyncpa [#allocation12], 1
    %861 = vsyncpa [#allocation4], 1
    %s862 = scalar_lea.sflag [#allocation4], 1
    %863 = vsyncpa %s862, 1

</llo_original>
